<compile_context>
chip_gen: v7x
topology: tpu7x:2x2x1
jax: 0.10.0
libtpu: 0.0.40
codegen_flags: <defaults>
</compile_context>

<pallas_src>
import math
import numpy as np
import jax
import jax.numpy as jnp
from jax.experimental import pallas as pl
from jax.experimental.pallas import tpu as pltpu

# ----------------------------- small synthetic config -----------------------------
NUM_CLASSES   = 6                      # len(le.classes_)
SRC_DIM       = NUM_CLASSES + 2        # 8
ITEM_ID_DIM   = 8
ITEM_CAT_DIM  = 8
PROD_CITY_DIM = 8
D_MODEL       = SRC_DIM + ITEM_ID_DIM + ITEM_CAT_DIM + PROD_CITY_DIM   # 32
FEATURE_SIZE  = D_MODEL
NHEAD         = 1
NUM_LAYERS    = 2
DIM_FF        = 64
MAX_ITEM_ID   = 10
MAX_ITEM_CAT  = 7
MAX_PROD_CITY = 5
BATCH         = 2
SEQ           = 8
BS            = BATCH * SEQ            # 16 folded rows
LN_EPS        = 1e-5

VOCAB_TOTAL   = MAX_ITEM_ID + MAX_ITEM_CAT + MAX_PROD_CITY   # 22
VOCAB_PAD     = 24                                            # pad rows to multiple of 8

# ----------------------------- constant-slab layout (all offsets 8-aligned) --------
SLAB_COLS = 3 * D_MODEL                # 96
# per-layer block
L_QKV_W   = 0                          # (32, 96)
L_OW      = 32                         # (32, 32)
L_L1W     = 64                         # (32, 64)
L_L2W     = 96                         # (64, 32)
L_VEC     = 160                        # (8, 96) rows: ipb, ob, ln1w, ln1b, l1b, l2b, ln2w, ln2b
LAYER_ROWS = 168
# globals
G_FVEC    = NUM_LAYERS * LAYER_ROWS    # 336: rows lnfw, lnfb, outb
G_OUTW    = G_FVEC + 8                 # 344: (32, 32)
G_EMB     = G_OUTW + D_MODEL           # 376: (24, 32) block-structured embedding table
G_PE      = G_EMB + VOCAB_PAD          # 400: (16, 32) tiled positional encoding
G_MASK    = G_PE + BS                  # 416: (16, 16) additive 0 / -1e30 mask bias
SLAB_ROWS = G_MASK + BS                # 432


# ----------------------------- positional encoding (module constant) ---------------
def positional_encoding(seq_len, d_model):
    """Exact reproduction of the (non-standard) torch positional_encoding()."""
    pe = np.zeros((seq_len, d_model), dtype=np.float32)
    for pos in range(seq_len):
        for i in range(0, d_model, 2):
            pe[pos, i] = math.sin(pos / 10000 ** (2 * i / d_model))
            if i + 1 < d_model:
                pe[pos, i + 1] = math.cos(pos / 10000 ** (2 * (i + 1) / d_model))
    return pe


_PE_NP   = positional_encoding(SEQ, D_MODEL)          # (S, D) hoisted, computed once
PE_CONST = jnp.asarray(_PE_NP)                        # for the pure-JAX reference


# ----------------------------- host-side constant packing (runs once) --------------
def pack_params(params):
    slab = np.zeros((SLAB_ROWS, SLAB_COLS), np.float32)
    for l in range(NUM_LAYERS):
        b = l * LAYER_ROWS
        slab[b + L_QKV_W: b + L_QKV_W + D_MODEL, :3 * D_MODEL] = np.asarray(params['ipw'][l])
        slab[b + L_OW:    b + L_OW + D_MODEL,    :D_MODEL]     = np.asarray(params['ow'][l])
        slab[b + L_L1W:   b + L_L1W + D_MODEL,   :DIM_FF]      = np.asarray(params['l1w'][l])
        slab[b + L_L2W:   b + L_L2W + DIM_FF,    :D_MODEL]     = np.asarray(params['l2w'][l])
        v = b + L_VEC
        slab[v + 0, :3 * D_MODEL] = np.asarray(params['ipb'][l][0])
        slab[v + 1, :D_MODEL]     = np.asarray(params['ob'][l][0])
        slab[v + 2, :D_MODEL]     = np.asarray(params['ln1w'][l][0])
        slab[v + 3, :D_MODEL]     = np.asarray(params['ln1b'][l][0])
        slab[v + 4, :DIM_FF]      = np.asarray(params['l1b'][l][0])
        slab[v + 5, :D_MODEL]     = np.asarray(params['l2b'][l][0])
        slab[v + 6, :D_MODEL]     = np.asarray(params['ln2w'][l][0])
        slab[v + 7, :D_MODEL]     = np.asarray(params['ln2b'][l][0])
    slab[G_FVEC + 0, :D_MODEL]      = np.asarray(params['lnfw'][0])
    slab[G_FVEC + 1, :D_MODEL]      = np.asarray(params['lnfb'][0])
    slab[G_FVEC + 2, :FEATURE_SIZE] = np.asarray(params['outb'][0])
    slab[G_OUTW:G_OUTW + D_MODEL, :FEATURE_SIZE] = np.asarray(params['outw'])

    # block-structured combined embedding table: disjoint vocab row ranges,
    # disjoint column blocks — one multi-hot @ table == gather + concat.
    r0 = G_EMB
    slab[r0: r0 + MAX_ITEM_ID, SRC_DIM:SRC_DIM + ITEM_ID_DIM] = np.asarray(params['item_id_emb'])
    r1 = r0 + MAX_ITEM_ID
    slab[r1: r1 + MAX_ITEM_CAT,
         SRC_DIM + ITEM_ID_DIM:SRC_DIM + ITEM_ID_DIM + ITEM_CAT_DIM] = np.asarray(params['item_cat_emb'])
    r2 = r1 + MAX_ITEM_CAT
    slab[r2: r2 + MAX_PROD_CITY,
         SRC_DIM + ITEM_ID_DIM + ITEM_CAT_DIM:D_MODEL] = np.asarray(params['prod_city_emb'])

    # tiled positional encoding for the batch-folded rows
    slab[G_PE:G_PE + BS, :D_MODEL] = np.tile(_PE_NP, (BATCH, 1))

    # additive block-diagonal attention mask bias
    mask = np.full((BS, BS), -1e30, np.float32)
    for bi in range(BATCH):
        mask[bi * SEQ:(bi + 1) * SEQ, bi * SEQ:(bi + 1) * SEQ] = 0.0
    slab[G_MASK:G_MASK + BS, :BS] = mask
    return jnp.asarray(slab)


# ----------------------------- Pallas kernel -----------------------------
def _layer_norm(y, w, b):
    mu = jnp.mean(y, axis=-1, keepdims=True)
    var = jnp.mean(jnp.square(y - mu), axis=-1, keepdims=True)
    return (y - mu) * jax.lax.rsqrt(var + LN_EPS) * w + b


def transformer_kernel(src_ref, idx_ref, slab_ref, o_ref):
    f32 = jnp.float32
    scale = 1.0 / math.sqrt(D_MODEL / NHEAD)          # nhead=1 -> head_dim = D_MODEL

    # --- fused embedding gathers + concat: one multi-hot @ block-structured table ---
    lanes = jax.lax.broadcasted_iota(jnp.int32, (BS, VOCAB_PAD), 1)
    hot = ((lanes == idx_ref[0]) |
           (lanes == idx_ref[1]) |
           (lanes == idx_ref[2])).astype(f32)          # (BS, VOCAB_PAD), 3 ones per row
    emb_tab = slab_ref[G_EMB:G_EMB + VOCAB_PAD, 0:D_MODEL]
    pe      = slab_ref[G_PE:G_PE + BS, 0:D_MODEL]
    x = jnp.dot(hot, emb_tab, preferred_element_type=f32) + src_ref[...] + pe   # (BS, D)

    mask_bias = slab_ref[G_MASK:G_MASK + BS, 0:BS]     # 0 on same-batch block, -1e30 elsewhere

    for l in range(NUM_LAYERS):                        # static unrolled loop
        base = l * LAYER_ROWS
        wqkv = slab_ref[base + L_QKV_W: base + L_QKV_W + D_MODEL, 0:3 * D_MODEL]
        w_o  = slab_ref[base + L_OW:    base + L_OW + D_MODEL,    0:D_MODEL]
        w_1  = slab_ref[base + L_L1W:   base + L_L1W + D_MODEL,   0:DIM_FF]
        w_2  = slab_ref[base + L_L2W:   base + L_L2W + DIM_FF,    0:D_MODEL]
        vb = base + L_VEC
        b_qkv = slab_ref[vb + 0: vb + 1, 0:3 * D_MODEL]
        b_o   = slab_ref[vb + 1: vb + 2, 0:D_MODEL]
        ln1w  = slab_ref[vb + 2: vb + 3, 0:D_MODEL]
        ln1b  = slab_ref[vb + 3: vb + 4, 0:D_MODEL]
        b_1   = slab_ref[vb + 4: vb + 5, 0:DIM_FF]
        b_2   = slab_ref[vb + 5: vb + 6, 0:D_MODEL]
        ln2w  = slab_ref[vb + 6: vb + 7, 0:D_MODEL]
        ln2b  = slab_ref[vb + 7: vb + 8, 0:D_MODEL]

        # --- self attention (single head, batch folded into sublanes) ---
        qkv = jnp.dot(x, wqkv, preferred_element_type=f32) + b_qkv
        q = qkv[:, 0:D_MODEL]
        k = qkv[:, D_MODEL:2 * D_MODEL]
        v = qkv[:, 2 * D_MODEL:3 * D_MODEL]
        scores = jax.lax.dot_general(q, k, (((1,), (1,)), ((), ())),
                                     preferred_element_type=f32) * scale + mask_bias
        m = jnp.max(scores, axis=-1, keepdims=True)
        p = jnp.exp(scores - m)
        p = p * pl.reciprocal(jnp.sum(p, axis=-1, keepdims=True), approx=True)
        ctx = jnp.dot(p, v, preferred_element_type=f32)
        attn = jnp.dot(ctx, w_o, preferred_element_type=f32) + b_o
        x = _layer_norm(x + attn, ln1w, ln1b)

        # --- feed forward (ReLU) ---
        h = jnp.maximum(jnp.dot(x, w_1, preferred_element_type=f32) + b_1, 0.0)
        ff = jnp.dot(h, w_2, preferred_element_type=f32) + b_2
        x = _layer_norm(x + ff, ln2w, ln2b)

    # final encoder LayerNorm + output Linear for ALL rows (one MXU pass);
    # the last-timestep selection is a free slice in the jitted wrapper.
    lnfw = slab_ref[G_FVEC + 0: G_FVEC + 1, 0:D_MODEL]
    lnfb = slab_ref[G_FVEC + 1: G_FVEC + 2, 0:D_MODEL]
    outb = slab_ref[G_FVEC + 2: G_FVEC + 3, 0:FEATURE_SIZE]
    outw = slab_ref[G_OUTW: G_OUTW + D_MODEL, 0:FEATURE_SIZE]
    x = _layer_norm(x, lnfw, lnfb)
    o_ref[...] = (jnp.dot(x, outw, preferred_element_type=f32) + outb).astype(o_ref.dtype)


# ----------------------------- wrapper -----------------------------
@jax.jit
def transformer_forward(src, item_ids, item_cats, prod_cities, slab):
    B, S, _ = src.shape
    assert B == BATCH and S == SEQ
    bs = B * S

    # trivial prep ops (fused by XLA inside this jit); everything else is in-kernel
    src_pad = jnp.pad(src.reshape(bs, SRC_DIM).astype(jnp.float32),
                      ((0, 0), (0, D_MODEL - SRC_DIM)))                 # (BS, 32)
    ids     = item_ids.reshape(bs).astype(jnp.int32)
    cats    = item_cats.reshape(bs).astype(jnp.int32) + MAX_ITEM_ID
    cities  = prod_cities.reshape(bs).astype(jnp.int32) + MAX_ITEM_ID + MAX_ITEM_CAT
    idx3    = jnp.stack([ids, cats, cities]).reshape(3, bs, 1)          # (3, BS, 1)

    out_full = pl.pallas_call(
        transformer_kernel,
        out_shape=jax.ShapeDtypeStruct((bs, FEATURE_SIZE), jnp.float32),
        in_specs=[pl.BlockSpec(memory_space=pltpu.MemorySpace.VMEM)] * 3,
        out_specs=pl.BlockSpec(memory_space=pltpu.MemorySpace.VMEM),
        cost_estimate=pl.CostEstimate(flops=700_000, transcendentals=650,
                                      bytes_accessed=180_000),
    )(src_pad, idx3, slab)

    # last timestep of each batch row — free slice, fused by XLA
    return out_full.reshape(B, S, FEATURE_SIZE)[:, -1, :]


# ----------------------------- parameters (deterministic) -----------------------------
def init_params(key):
    keys = jax.random.split(key, 16)

    def nrm(k, shape, scale=0.05):
        return (scale * jax.random.normal(k, shape)).astype(jnp.float32)

    p = {}
    p['item_id_emb']   = nrm(keys[0], (MAX_ITEM_ID, ITEM_ID_DIM), 1.0)
    p['item_cat_emb']  = nrm(keys[1], (MAX_ITEM_CAT, ITEM_CAT_DIM), 1.0)
    p['prod_city_emb'] = nrm(keys[2], (MAX_PROD_CITY, PROD_CITY_DIM), 1.0)
    # transformer encoder layers (weights stored transposed: x @ W)
    p['ipw'] = nrm(keys[3],  (NUM_LAYERS, D_MODEL, 3 * D_MODEL))
    p['ipb'] = nrm(keys[4],  (NUM_LAYERS, 1, 3 * D_MODEL))
    p['ow']  = nrm(keys[5],  (NUM_LAYERS, D_MODEL, D_MODEL))
    p['ob']  = nrm(keys[6],  (NUM_LAYERS, 1, D_MODEL))
    p['ln1w'] = jnp.ones((NUM_LAYERS, 1, D_MODEL), jnp.float32)
    p['ln1b'] = jnp.zeros((NUM_LAYERS, 1, D_MODEL), jnp.float32)
    p['l1w'] = nrm(keys[7],  (NUM_LAYERS, D_MODEL, DIM_FF))
    p['l1b'] = nrm(keys[8],  (NUM_LAYERS, 1, DIM_FF))
    p['l2w'] = nrm(keys[9],  (NUM_LAYERS, DIM_FF, D_MODEL))
    p['l2b'] = nrm(keys[10], (NUM_LAYERS, 1, D_MODEL))
    p['ln2w'] = jnp.ones((NUM_LAYERS, 1, D_MODEL), jnp.float32)
    p['ln2b'] = jnp.zeros((NUM_LAYERS, 1, D_MODEL), jnp.float32)
    p['lnfw'] = jnp.ones((1, D_MODEL), jnp.float32)
    p['lnfb'] = jnp.zeros((1, D_MODEL), jnp.float32)
    p['outw'] = nrm(keys[11], (D_MODEL, FEATURE_SIZE))
    p['outb'] = nrm(keys[12], (1, FEATURE_SIZE))
    return p


# ----------------------------- pure-JAX reference (correctness check) -----------------------------
def embed_and_encode_ref(src, item_ids, item_cats, prod_cities, params):
    item_id_e = params['item_id_emb'][item_ids]
    cat_e     = params['item_cat_emb'][item_cats]
    city_e    = params['prod_city_emb'][prod_cities]
    x = jnp.concatenate([src, item_id_e, cat_e, city_e], axis=-1)
    return x + PE_CONST[None]


def forward_ref(src, item_ids, item_cats, prod_cities, params):
    x = embed_and_encode_ref(src, item_ids, item_cats, prod_cities, params)

    def ln(y, w, b):
        mu = y.mean(-1, keepdims=True)
        var = ((y - mu) ** 2).mean(-1, keepdims=True)
        return (y - mu) / jnp.sqrt(var + LN_EPS) * w + b

    scale = 1.0 / math.sqrt(D_MODEL / NHEAD)
    for l in range(NUM_LAYERS):
        qkv = x @ params['ipw'][l] + params['ipb'][l]
        q, k, v = (qkv[..., :D_MODEL], qkv[..., D_MODEL:2 * D_MODEL],
                   qkv[..., 2 * D_MODEL:])
        s = jnp.einsum('bqd,bkd->bqk', q, k) * scale
        a = jax.nn.softmax(s, axis=-1)
        ctx = jnp.einsum('bqk,bkd->bqd', a, v)
        attn = ctx @ params['ow'][l] + params['ob'][l]
        x = ln(x + attn, params['ln1w'][l], params['ln1b'][l])
        h = jnp.maximum(x @ params['l1w'][l] + params['l1b'][l], 0.0)
        ff = h @ params['l2w'][l] + params['l2b'][l]
        x = ln(x + ff, params['ln2w'][l], params['ln2b'][l])
    x = ln(x, params['lnfw'], params['lnfb'])
    return x[:, -1, :] @ params['outw'] + params['outb']


# ----------------------------- main -----------------------------
if __name__ == "__main__":
    key = jax.random.PRNGKey(0)
    k1, k2, k3, k4, k5 = jax.random.split(key, 5)
    params = init_params(k5)
    slab = pack_params(params)               # host-side, once, outside the hot path

    src         = jax.random.normal(k1, (BATCH, SEQ, SRC_DIM), jnp.float32)
    item_ids    = jax.random.randint(k2, (BATCH, SEQ), 0, MAX_ITEM_ID)
    item_cats   = jax.random.randint(k3, (BATCH, SEQ), 0, MAX_ITEM_CAT)
    prod_cities = jax.random.randint(k4, (BATCH, SEQ), 0, MAX_PROD_CITY)

    out = transformer_forward(src, item_ids, item_cats, prod_cities, slab)
    out = jax.block_until_ready(out)
    assert out.shape == (BATCH, FEATURE_SIZE)

    ref = forward_ref(src, item_ids, item_cats, prod_cities, params)
    assert jnp.allclose(out, ref, atol=2e-3, rtol=2e-3), "Pallas kernel mismatch vs reference"

    print("KERNEL_OK")
</pallas_src>

<mosaic_0001>
module attributes {stable_mosaic.version = 11 : i64} {
  func.func @transformer_kernel(%arg0: memref<16x32xf32, #tpu.memory_space<vmem>>, %arg1: memref<3x16x1xi32, #tpu.memory_space<vmem>>, %arg2: memref<432x96xf32, #tpu.memory_space<vmem>>, %arg3: memref<16x32xf32, #tpu.memory_space<vmem>>) attributes {dimension_semantics = [], scalar_prefetch = 0 : i64, scratch_operands = 0 : i64, tpu.core_type = #tpu.core_type<tc>} {
    %0 = tpu.iota {dimensions = array<i32: 1>} : vector<16x24xi32>
    %c0 = arith.constant 0 : index
    %c0_0 = arith.constant 0 : index
    %c0_1 = arith.constant 0 : index
    %1 = vector.load %arg1[%c0, %c0_0, %c0_1] : memref<3x16x1xi32, #tpu.memory_space<vmem>>, vector<1x16x1xi32>
    %2 = vector.shape_cast %1 : vector<1x16x1xi32> to vector<16x1xi32>
    %3 = vector.broadcast %2 : vector<16x1xi32> to vector<16x24xi32>
    %4 = arith.cmpi eq, %0, %3 : vector<16x24xi32>
    %c1 = arith.constant 1 : index
    %c0_2 = arith.constant 0 : index
    %c0_3 = arith.constant 0 : index
    %5 = vector.load %arg1[%c1, %c0_2, %c0_3] : memref<3x16x1xi32, #tpu.memory_space<vmem>>, vector<1x16x1xi32>
    %6 = vector.shape_cast %5 : vector<1x16x1xi32> to vector<16x1xi32>
    %7 = vector.broadcast %6 : vector<16x1xi32> to vector<16x24xi32>
    %8 = arith.cmpi eq, %0, %7 : vector<16x24xi32>
    %9 = arith.ori %4, %8 : vector<16x24xi1>
    %c2 = arith.constant 2 : index
    %c0_4 = arith.constant 0 : index
    %c0_5 = arith.constant 0 : index
    %10 = vector.load %arg1[%c2, %c0_4, %c0_5] : memref<3x16x1xi32, #tpu.memory_space<vmem>>, vector<1x16x1xi32>
    %11 = vector.shape_cast %10 : vector<1x16x1xi32> to vector<16x1xi32>
    %12 = vector.broadcast %11 : vector<16x1xi32> to vector<16x24xi32>
    %13 = arith.cmpi eq, %0, %12 : vector<16x24xi32>
    %14 = arith.ori %9, %13 : vector<16x24xi1>
    %15 = arith.extui %14 : vector<16x24xi1> to vector<16x24xi32>
    %16 = arith.sitofp %15 : vector<16x24xi32> to vector<16x24xf32>
    %c376 = arith.constant 376 : index
    %c0_6 = arith.constant 0 : index
    %17 = vector.load %arg2[%c376, %c0_6] : memref<432x96xf32, #tpu.memory_space<vmem>>, vector<24x32xf32>
    %c400 = arith.constant 400 : index
    %c0_7 = arith.constant 0 : index
    %18 = vector.load %arg2[%c400, %c0_7] : memref<432x96xf32, #tpu.memory_space<vmem>>, vector<16x32xf32>
    %cst = arith.constant dense<0.000000e+00> : vector<16x32xf32>
    %19 = tpu.matmul %16, %17, %cst {dimension_numbers = #tpu.dot_dimension_numbers<[1], [0], [0], [1], [0, 0, 1, 1], [], []>} : vector<16x24xf32>, vector<24x32xf32>, vector<16x32xf32> -> vector<16x32xf32>
    %c0_8 = arith.constant 0 : index
    %c0_9 = arith.constant 0 : index
    %20 = vector.load %arg0[%c0_8, %c0_9] : memref<16x32xf32, #tpu.memory_space<vmem>>, vector<16x32xf32>
    %21 = arith.addf %19, %20 : vector<16x32xf32>
    %22 = arith.addf %21, %18 : vector<16x32xf32>
    %c416 = arith.constant 416 : index
    %c0_10 = arith.constant 0 : index
    %23 = vector.load %arg2[%c416, %c0_10] : memref<432x96xf32, #tpu.memory_space<vmem>>, vector<16x16xf32>
    %c0_11 = arith.constant 0 : index
    %c0_12 = arith.constant 0 : index
    %24 = vector.load %arg2[%c0_11, %c0_12] : memref<432x96xf32, #tpu.memory_space<vmem>>, vector<32x96xf32>
    %c32 = arith.constant 32 : index
    %c0_13 = arith.constant 0 : index
    %25 = vector.load %arg2[%c32, %c0_13] : memref<432x96xf32, #tpu.memory_space<vmem>>, vector<32x32xf32>
    %c64 = arith.constant 64 : index
    %c0_14 = arith.constant 0 : index
    %26 = vector.load %arg2[%c64, %c0_14] : memref<432x96xf32, #tpu.memory_space<vmem>>, vector<32x64xf32>
    %c96 = arith.constant 96 : index
    %c0_15 = arith.constant 0 : index
    %27 = vector.load %arg2[%c96, %c0_15] : memref<432x96xf32, #tpu.memory_space<vmem>>, vector<64x32xf32>
    %c160 = arith.constant 160 : index
    %c0_16 = arith.constant 0 : index
    %28 = vector.load %arg2[%c160, %c0_16] : memref<432x96xf32, #tpu.memory_space<vmem>>, vector<1x96xf32>
    %c161 = arith.constant 161 : index
    %c0_17 = arith.constant 0 : index
    %29 = vector.load %arg2[%c161, %c0_17] : memref<432x96xf32, #tpu.memory_space<vmem>>, vector<1x32xf32>
    %c162 = arith.constant 162 : index
    %c0_18 = arith.constant 0 : index
    %30 = vector.load %arg2[%c162, %c0_18] : memref<432x96xf32, #tpu.memory_space<vmem>>, vector<1x32xf32>
    %c163 = arith.constant 163 : index
    %c0_19 = arith.constant 0 : index
    %31 = vector.load %arg2[%c163, %c0_19] : memref<432x96xf32, #tpu.memory_space<vmem>>, vector<1x32xf32>
    %c164 = arith.constant 164 : index
    %c0_20 = arith.constant 0 : index
    %32 = vector.load %arg2[%c164, %c0_20] : memref<432x96xf32, #tpu.memory_space<vmem>>, vector<1x64xf32>
    %c165 = arith.constant 165 : index
    %c0_21 = arith.constant 0 : index
    %33 = vector.load %arg2[%c165, %c0_21] : memref<432x96xf32, #tpu.memory_space<vmem>>, vector<1x32xf32>
    %c166 = arith.constant 166 : index
    %c0_22 = arith.constant 0 : index
    %34 = vector.load %arg2[%c166, %c0_22] : memref<432x96xf32, #tpu.memory_space<vmem>>, vector<1x32xf32>
    %c167 = arith.constant 167 : index
    %c0_23 = arith.constant 0 : index
    %35 = vector.load %arg2[%c167, %c0_23] : memref<432x96xf32, #tpu.memory_space<vmem>>, vector<1x32xf32>
    %cst_24 = arith.constant dense<0.000000e+00> : vector<16x96xf32>
    %36 = tpu.matmul %22, %24, %cst_24 {dimension_numbers = #tpu.dot_dimension_numbers<[1], [0], [0], [1], [0, 0, 1, 1], [], []>} : vector<16x32xf32>, vector<32x96xf32>, vector<16x96xf32> -> vector<16x96xf32>
    %37 = vector.broadcast %28 : vector<1x96xf32> to vector<16x96xf32>
    %38 = arith.addf %36, %37 : vector<16x96xf32>
    %39 = vector.extract_strided_slice %38 {offsets = [0, 0], sizes = [16, 32], strides = [1, 1]} : vector<16x96xf32> to vector<16x32xf32>
    %40 = vector.extract_strided_slice %38 {offsets = [0, 32], sizes = [16, 32], strides = [1, 1]} : vector<16x96xf32> to vector<16x32xf32>
    %41 = vector.extract_strided_slice %38 {offsets = [0, 64], sizes = [16, 32], strides = [1, 1]} : vector<16x96xf32> to vector<16x32xf32>
    %cst_25 = arith.constant dense<0.000000e+00> : vector<16x16xf32>
    %42 = tpu.matmul %39, %40, %cst_25 {dimension_numbers = #tpu.dot_dimension_numbers<[1], [1], [0], [0], [0, 0, 1, 0], [], []>} : vector<16x32xf32>, vector<16x32xf32>, vector<16x16xf32> -> vector<16x16xf32>
    %cst_26 = arith.constant 0.176776692 : f32
    %43 = vector.broadcast %cst_26 : f32 to vector<16x16xf32>
    %44 = arith.mulf %42, %43 : vector<16x16xf32>
    %45 = arith.addf %44, %23 : vector<16x16xf32>
    %cst_27 = arith.constant dense<0xFF800000> : vector<16xf32>
    %46 = vector.multi_reduction <maximumf>, %45, %cst_27 [1] : vector<16x16xf32> to vector<16xf32>
    %47 = vector.shape_cast %46 : vector<16xf32> to vector<16x1xf32>
    %48 = vector.broadcast %47 : vector<16x1xf32> to vector<16x16xf32>
    %49 = arith.subf %45, %48 : vector<16x16xf32>
    %50 = math.exp %49 : vector<16x16xf32>
    %cst_28 = arith.constant dense<0.000000e+00> : vector<16xf32>
    %51 = vector.multi_reduction <add>, %50, %cst_28 [1] : vector<16x16xf32> to vector<16xf32>
    %52 = vector.shape_cast %51 : vector<16xf32> to vector<16x1xf32>
    %53 = tpu.reciprocal %52 {approx = true} : vector<16x1xf32> -> vector<16x1xf32>
    %54 = vector.broadcast %53 : vector<16x1xf32> to vector<16x16xf32>
    %55 = arith.mulf %50, %54 : vector<16x16xf32>
    %cst_29 = arith.constant dense<0.000000e+00> : vector<16x32xf32>
    %56 = tpu.matmul %55, %41, %cst_29 {dimension_numbers = #tpu.dot_dimension_numbers<[1], [0], [0], [1], [0, 0, 1, 1], [], []>} : vector<16x16xf32>, vector<16x32xf32>, vector<16x32xf32> -> vector<16x32xf32>
    %cst_30 = arith.constant dense<0.000000e+00> : vector<16x32xf32>
    %57 = tpu.matmul %56, %25, %cst_30 {dimension_numbers = #tpu.dot_dimension_numbers<[1], [0], [0], [1], [0, 0, 1, 1], [], []>} : vector<16x32xf32>, vector<32x32xf32>, vector<16x32xf32> -> vector<16x32xf32>
    %58 = vector.broadcast %29 : vector<1x32xf32> to vector<16x32xf32>
    %59 = arith.addf %57, %58 : vector<16x32xf32>
    %60 = arith.addf %22, %59 : vector<16x32xf32>
    %cst_31 = arith.constant dense<0.000000e+00> : vector<16xf32>
    %61 = vector.multi_reduction <add>, %60, %cst_31 [1] : vector<16x32xf32> to vector<16xf32>
    %62 = vector.shape_cast %61 : vector<16xf32> to vector<16x1xf32>
    %cst_32 = arith.constant 3.200000e+01 : f32
    %63 = vector.broadcast %cst_32 : f32 to vector<16x1xf32>
    %64 = arith.divf %62, %63 : vector<16x1xf32>
    %65 = vector.broadcast %64 : vector<16x1xf32> to vector<16x32xf32>
    %66 = arith.subf %60, %65 : vector<16x32xf32>
    %67 = arith.mulf %66, %66 : vector<16x32xf32>
    %cst_33 = arith.constant dense<0.000000e+00> : vector<16xf32>
    %68 = vector.multi_reduction <add>, %67, %cst_33 [1] : vector<16x32xf32> to vector<16xf32>
    %69 = vector.shape_cast %68 : vector<16xf32> to vector<16x1xf32>
    %cst_34 = arith.constant 3.200000e+01 : f32
    %70 = vector.broadcast %cst_34 : f32 to vector<16x1xf32>
    %71 = arith.divf %69, %70 : vector<16x1xf32>
    %72 = vector.broadcast %64 : vector<16x1xf32> to vector<16x32xf32>
    %73 = arith.subf %60, %72 : vector<16x32xf32>
    %cst_35 = arith.constant 9.99999974E-6 : f32
    %74 = vector.broadcast %cst_35 : f32 to vector<16x1xf32>
    %75 = arith.addf %71, %74 : vector<16x1xf32>
    %76 = math.rsqrt %75 : vector<16x1xf32>
    %77 = vector.broadcast %76 : vector<16x1xf32> to vector<16x32xf32>
    %78 = arith.mulf %73, %77 : vector<16x32xf32>
    %79 = vector.broadcast %30 : vector<1x32xf32> to vector<16x32xf32>
    %80 = arith.mulf %78, %79 : vector<16x32xf32>
    %81 = vector.broadcast %31 : vector<1x32xf32> to vector<16x32xf32>
    %82 = arith.addf %80, %81 : vector<16x32xf32>
    %cst_36 = arith.constant dense<0.000000e+00> : vector<16x64xf32>
    %83 = tpu.matmul %82, %26, %cst_36 {dimension_numbers = #tpu.dot_dimension_numbers<[1], [0], [0], [1], [0, 0, 1, 1], [], []>} : vector<16x32xf32>, vector<32x64xf32>, vector<16x64xf32> -> vector<16x64xf32>
    %84 = vector.broadcast %32 : vector<1x64xf32> to vector<16x64xf32>
    %85 = arith.addf %83, %84 : vector<16x64xf32>
    %cst_37 = arith.constant 0.000000e+00 : f32
    %86 = vector.broadcast %cst_37 : f32 to vector<16x64xf32>
    %87 = arith.maximumf %85, %86 : vector<16x64xf32>
    %cst_38 = arith.constant dense<0.000000e+00> : vector<16x32xf32>
    %88 = tpu.matmul %87, %27, %cst_38 {dimension_numbers = #tpu.dot_dimension_numbers<[1], [0], [0], [1], [0, 0, 1, 1], [], []>} : vector<16x64xf32>, vector<64x32xf32>, vector<16x32xf32> -> vector<16x32xf32>
    %89 = vector.broadcast %33 : vector<1x32xf32> to vector<16x32xf32>
    %90 = arith.addf %88, %89 : vector<16x32xf32>
    %91 = arith.addf %82, %90 : vector<16x32xf32>
    %cst_39 = arith.constant dense<0.000000e+00> : vector<16xf32>
    %92 = vector.multi_reduction <add>, %91, %cst_39 [1] : vector<16x32xf32> to vector<16xf32>
    %93 = vector.shape_cast %92 : vector<16xf32> to vector<16x1xf32>
    %cst_40 = arith.constant 3.200000e+01 : f32
    %94 = vector.broadcast %cst_40 : f32 to vector<16x1xf32>
    %95 = arith.divf %93, %94 : vector<16x1xf32>
    %96 = vector.broadcast %95 : vector<16x1xf32> to vector<16x32xf32>
    %97 = arith.subf %91, %96 : vector<16x32xf32>
    %98 = arith.mulf %97, %97 : vector<16x32xf32>
    %cst_41 = arith.constant dense<0.000000e+00> : vector<16xf32>
    %99 = vector.multi_reduction <add>, %98, %cst_41 [1] : vector<16x32xf32> to vector<16xf32>
    %100 = vector.shape_cast %99 : vector<16xf32> to vector<16x1xf32>
    %cst_42 = arith.constant 3.200000e+01 : f32
    %101 = vector.broadcast %cst_42 : f32 to vector<16x1xf32>
    %102 = arith.divf %100, %101 : vector<16x1xf32>
    %103 = vector.broadcast %95 : vector<16x1xf32> to vector<16x32xf32>
    %104 = arith.subf %91, %103 : vector<16x32xf32>
    %cst_43 = arith.constant 9.99999974E-6 : f32
    %105 = vector.broadcast %cst_43 : f32 to vector<16x1xf32>
    %106 = arith.addf %102, %105 : vector<16x1xf32>
    %107 = math.rsqrt %106 : vector<16x1xf32>
    %108 = vector.broadcast %107 : vector<16x1xf32> to vector<16x32xf32>
    %109 = arith.mulf %104, %108 : vector<16x32xf32>
    %110 = vector.broadcast %34 : vector<1x32xf32> to vector<16x32xf32>
    %111 = arith.mulf %109, %110 : vector<16x32xf32>
    %112 = vector.broadcast %35 : vector<1x32xf32> to vector<16x32xf32>
    %113 = arith.addf %111, %112 : vector<16x32xf32>
    %c168 = arith.constant 168 : index
    %c0_44 = arith.constant 0 : index
    %114 = vector.load %arg2[%c168, %c0_44] : memref<432x96xf32, #tpu.memory_space<vmem>>, vector<32x96xf32>
    %c200 = arith.constant 200 : index
    %c0_45 = arith.constant 0 : index
    %115 = vector.load %arg2[%c200, %c0_45] : memref<432x96xf32, #tpu.memory_space<vmem>>, vector<32x32xf32>
    %c232 = arith.constant 232 : index
    %c0_46 = arith.constant 0 : index
    %116 = vector.load %arg2[%c232, %c0_46] : memref<432x96xf32, #tpu.memory_space<vmem>>, vector<32x64xf32>
    %c264 = arith.constant 264 : index
    %c0_47 = arith.constant 0 : index
    %117 = vector.load %arg2[%c264, %c0_47] : memref<432x96xf32, #tpu.memory_space<vmem>>, vector<64x32xf32>
    %c328 = arith.constant 328 : index
    %c0_48 = arith.constant 0 : index
    %118 = vector.load %arg2[%c328, %c0_48] : memref<432x96xf32, #tpu.memory_space<vmem>>, vector<1x96xf32>
    %c329 = arith.constant 329 : index
    %c0_49 = arith.constant 0 : index
    %119 = vector.load %arg2[%c329, %c0_49] : memref<432x96xf32, #tpu.memory_space<vmem>>, vector<1x32xf32>
    %c330 = arith.constant 330 : index
    %c0_50 = arith.constant 0 : index
    %120 = vector.load %arg2[%c330, %c0_50] : memref<432x96xf32, #tpu.memory_space<vmem>>, vector<1x32xf32>
    %c331 = arith.constant 331 : index
    %c0_51 = arith.constant 0 : index
    %121 = vector.load %arg2[%c331, %c0_51] : memref<432x96xf32, #tpu.memory_space<vmem>>, vector<1x32xf32>
    %c332 = arith.constant 332 : index
    %c0_52 = arith.constant 0 : index
    %122 = vector.load %arg2[%c332, %c0_52] : memref<432x96xf32, #tpu.memory_space<vmem>>, vector<1x64xf32>
    %c333 = arith.constant 333 : index
    %c0_53 = arith.constant 0 : index
    %123 = vector.load %arg2[%c333, %c0_53] : memref<432x96xf32, #tpu.memory_space<vmem>>, vector<1x32xf32>
    %c334 = arith.constant 334 : index
    %c0_54 = arith.constant 0 : index
    %124 = vector.load %arg2[%c334, %c0_54] : memref<432x96xf32, #tpu.memory_space<vmem>>, vector<1x32xf32>
    %c335 = arith.constant 335 : index
    %c0_55 = arith.constant 0 : index
    %125 = vector.load %arg2[%c335, %c0_55] : memref<432x96xf32, #tpu.memory_space<vmem>>, vector<1x32xf32>
    %cst_56 = arith.constant dense<0.000000e+00> : vector<16x96xf32>
    %126 = tpu.matmul %113, %114, %cst_56 {dimension_numbers = #tpu.dot_dimension_numbers<[1], [0], [0], [1], [0, 0, 1, 1], [], []>} : vector<16x32xf32>, vector<32x96xf32>, vector<16x96xf32> -> vector<16x96xf32>
    %127 = vector.broadcast %118 : vector<1x96xf32> to vector<16x96xf32>
    %128 = arith.addf %126, %127 : vector<16x96xf32>
    %129 = vector.extract_strided_slice %128 {offsets = [0, 0], sizes = [16, 32], strides = [1, 1]} : vector<16x96xf32> to vector<16x32xf32>
    %130 = vector.extract_strided_slice %128 {offsets = [0, 32], sizes = [16, 32], strides = [1, 1]} : vector<16x96xf32> to vector<16x32xf32>
    %131 = vector.extract_strided_slice %128 {offsets = [0, 64], sizes = [16, 32], strides = [1, 1]} : vector<16x96xf32> to vector<16x32xf32>
    %cst_57 = arith.constant dense<0.000000e+00> : vector<16x16xf32>
    %132 = tpu.matmul %129, %130, %cst_57 {dimension_numbers = #tpu.dot_dimension_numbers<[1], [1], [0], [0], [0, 0, 1, 0], [], []>} : vector<16x32xf32>, vector<16x32xf32>, vector<16x16xf32> -> vector<16x16xf32>
    %cst_58 = arith.constant 0.176776692 : f32
    %133 = vector.broadcast %cst_58 : f32 to vector<16x16xf32>
    %134 = arith.mulf %132, %133 : vector<16x16xf32>
    %135 = arith.addf %134, %23 : vector<16x16xf32>
    %cst_59 = arith.constant dense<0xFF800000> : vector<16xf32>
    %136 = vector.multi_reduction <maximumf>, %135, %cst_59 [1] : vector<16x16xf32> to vector<16xf32>
    %137 = vector.shape_cast %136 : vector<16xf32> to vector<16x1xf32>
    %138 = vector.broadcast %137 : vector<16x1xf32> to vector<16x16xf32>
    %139 = arith.subf %135, %138 : vector<16x16xf32>
    %140 = math.exp %139 : vector<16x16xf32>
    %cst_60 = arith.constant dense<0.000000e+00> : vector<16xf32>
    %141 = vector.multi_reduction <add>, %140, %cst_60 [1] : vector<16x16xf32> to vector<16xf32>
    %142 = vector.shape_cast %141 : vector<16xf32> to vector<16x1xf32>
    %143 = tpu.reciprocal %142 {approx = true} : vector<16x1xf32> -> vector<16x1xf32>
    %144 = vector.broadcast %143 : vector<16x1xf32> to vector<16x16xf32>
    %145 = arith.mulf %140, %144 : vector<16x16xf32>
    %cst_61 = arith.constant dense<0.000000e+00> : vector<16x32xf32>
    %146 = tpu.matmul %145, %131, %cst_61 {dimension_numbers = #tpu.dot_dimension_numbers<[1], [0], [0], [1], [0, 0, 1, 1], [], []>} : vector<16x16xf32>, vector<16x32xf32>, vector<16x32xf32> -> vector<16x32xf32>
    %cst_62 = arith.constant dense<0.000000e+00> : vector<16x32xf32>
    %147 = tpu.matmul %146, %115, %cst_62 {dimension_numbers = #tpu.dot_dimension_numbers<[1], [0], [0], [1], [0, 0, 1, 1], [], []>} : vector<16x32xf32>, vector<32x32xf32>, vector<16x32xf32> -> vector<16x32xf32>
    %148 = vector.broadcast %119 : vector<1x32xf32> to vector<16x32xf32>
    %149 = arith.addf %147, %148 : vector<16x32xf32>
    %150 = arith.addf %113, %149 : vector<16x32xf32>
    %cst_63 = arith.constant dense<0.000000e+00> : vector<16xf32>
    %151 = vector.multi_reduction <add>, %150, %cst_63 [1] : vector<16x32xf32> to vector<16xf32>
    %152 = vector.shape_cast %151 : vector<16xf32> to vector<16x1xf32>
    %cst_64 = arith.constant 3.200000e+01 : f32
    %153 = vector.broadcast %cst_64 : f32 to vector<16x1xf32>
    %154 = arith.divf %152, %153 : vector<16x1xf32>
    %155 = vector.broadcast %154 : vector<16x1xf32> to vector<16x32xf32>
    %156 = arith.subf %150, %155 : vector<16x32xf32>
    %157 = arith.mulf %156, %156 : vector<16x32xf32>
    %cst_65 = arith.constant dense<0.000000e+00> : vector<16xf32>
    %158 = vector.multi_reduction <add>, %157, %cst_65 [1] : vector<16x32xf32> to vector<16xf32>
    %159 = vector.shape_cast %158 : vector<16xf32> to vector<16x1xf32>
    %cst_66 = arith.constant 3.200000e+01 : f32
    %160 = vector.broadcast %cst_66 : f32 to vector<16x1xf32>
    %161 = arith.divf %159, %160 : vector<16x1xf32>
    %162 = vector.broadcast %154 : vector<16x1xf32> to vector<16x32xf32>
    %163 = arith.subf %150, %162 : vector<16x32xf32>
    %cst_67 = arith.constant 9.99999974E-6 : f32
    %164 = vector.broadcast %cst_67 : f32 to vector<16x1xf32>
    %165 = arith.addf %161, %164 : vector<16x1xf32>
    %166 = math.rsqrt %165 : vector<16x1xf32>
    %167 = vector.broadcast %166 : vector<16x1xf32> to vector<16x32xf32>
    %168 = arith.mulf %163, %167 : vector<16x32xf32>
    %169 = vector.broadcast %120 : vector<1x32xf32> to vector<16x32xf32>
    %170 = arith.mulf %168, %169 : vector<16x32xf32>
    %171 = vector.broadcast %121 : vector<1x32xf32> to vector<16x32xf32>
    %172 = arith.addf %170, %171 : vector<16x32xf32>
    %cst_68 = arith.constant dense<0.000000e+00> : vector<16x64xf32>
    %173 = tpu.matmul %172, %116, %cst_68 {dimension_numbers = #tpu.dot_dimension_numbers<[1], [0], [0], [1], [0, 0, 1, 1], [], []>} : vector<16x32xf32>, vector<32x64xf32>, vector<16x64xf32> -> vector<16x64xf32>
    %174 = vector.broadcast %122 : vector<1x64xf32> to vector<16x64xf32>
    %175 = arith.addf %173, %174 : vector<16x64xf32>
    %cst_69 = arith.constant 0.000000e+00 : f32
    %176 = vector.broadcast %cst_69 : f32 to vector<16x64xf32>
    %177 = arith.maximumf %175, %176 : vector<16x64xf32>
    %cst_70 = arith.constant dense<0.000000e+00> : vector<16x32xf32>
    %178 = tpu.matmul %177, %117, %cst_70 {dimension_numbers = #tpu.dot_dimension_numbers<[1], [0], [0], [1], [0, 0, 1, 1], [], []>} : vector<16x64xf32>, vector<64x32xf32>, vector<16x32xf32> -> vector<16x32xf32>
    %179 = vector.broadcast %123 : vector<1x32xf32> to vector<16x32xf32>
    %180 = arith.addf %178, %179 : vector<16x32xf32>
    %181 = arith.addf %172, %180 : vector<16x32xf32>
    %cst_71 = arith.constant dense<0.000000e+00> : vector<16xf32>
    %182 = vector.multi_reduction <add>, %181, %cst_71 [1] : vector<16x32xf32> to vector<16xf32>
    %183 = vector.shape_cast %182 : vector<16xf32> to vector<16x1xf32>
    %cst_72 = arith.constant 3.200000e+01 : f32
    %184 = vector.broadcast %cst_72 : f32 to vector<16x1xf32>
    %185 = arith.divf %183, %184 : vector<16x1xf32>
    %186 = vector.broadcast %185 : vector<16x1xf32> to vector<16x32xf32>
    %187 = arith.subf %181, %186 : vector<16x32xf32>
    %188 = arith.mulf %187, %187 : vector<16x32xf32>
    %cst_73 = arith.constant dense<0.000000e+00> : vector<16xf32>
    %189 = vector.multi_reduction <add>, %188, %cst_73 [1] : vector<16x32xf32> to vector<16xf32>
    %190 = vector.shape_cast %189 : vector<16xf32> to vector<16x1xf32>
    %cst_74 = arith.constant 3.200000e+01 : f32
    %191 = vector.broadcast %cst_74 : f32 to vector<16x1xf32>
    %192 = arith.divf %190, %191 : vector<16x1xf32>
    %193 = vector.broadcast %185 : vector<16x1xf32> to vector<16x32xf32>
    %194 = arith.subf %181, %193 : vector<16x32xf32>
    %cst_75 = arith.constant 9.99999974E-6 : f32
    %195 = vector.broadcast %cst_75 : f32 to vector<16x1xf32>
    %196 = arith.addf %192, %195 : vector<16x1xf32>
    %197 = math.rsqrt %196 : vector<16x1xf32>
    %198 = vector.broadcast %197 : vector<16x1xf32> to vector<16x32xf32>
    %199 = arith.mulf %194, %198 : vector<16x32xf32>
    %200 = vector.broadcast %124 : vector<1x32xf32> to vector<16x32xf32>
    %201 = arith.mulf %199, %200 : vector<16x32xf32>
    %202 = vector.broadcast %125 : vector<1x32xf32> to vector<16x32xf32>
    %203 = arith.addf %201, %202 : vector<16x32xf32>
    %c336 = arith.constant 336 : index
    %c0_76 = arith.constant 0 : index
    %204 = vector.load %arg2[%c336, %c0_76] : memref<432x96xf32, #tpu.memory_space<vmem>>, vector<1x32xf32>
    %c337 = arith.constant 337 : index
    %c0_77 = arith.constant 0 : index
    %205 = vector.load %arg2[%c337, %c0_77] : memref<432x96xf32, #tpu.memory_space<vmem>>, vector<1x32xf32>
    %c338 = arith.constant 338 : index
    %c0_78 = arith.constant 0 : index
    %206 = vector.load %arg2[%c338, %c0_78] : memref<432x96xf32, #tpu.memory_space<vmem>>, vector<1x32xf32>
    %c344 = arith.constant 344 : index
    %c0_79 = arith.constant 0 : index
    %207 = vector.load %arg2[%c344, %c0_79] : memref<432x96xf32, #tpu.memory_space<vmem>>, vector<32x32xf32>
    %cst_80 = arith.constant dense<0.000000e+00> : vector<16xf32>
    %208 = vector.multi_reduction <add>, %203, %cst_80 [1] : vector<16x32xf32> to vector<16xf32>
    %209 = vector.shape_cast %208 : vector<16xf32> to vector<16x1xf32>
    %cst_81 = arith.constant 3.200000e+01 : f32
    %210 = vector.broadcast %cst_81 : f32 to vector<16x1xf32>
    %211 = arith.divf %209, %210 : vector<16x1xf32>
    %212 = vector.broadcast %211 : vector<16x1xf32> to vector<16x32xf32>
    %213 = arith.subf %203, %212 : vector<16x32xf32>
    %214 = arith.mulf %213, %213 : vector<16x32xf32>
    %cst_82 = arith.constant dense<0.000000e+00> : vector<16xf32>
    %215 = vector.multi_reduction <add>, %214, %cst_82 [1] : vector<16x32xf32> to vector<16xf32>
    %216 = vector.shape_cast %215 : vector<16xf32> to vector<16x1xf32>
    %cst_83 = arith.constant 3.200000e+01 : f32
    %217 = vector.broadcast %cst_83 : f32 to vector<16x1xf32>
    %218 = arith.divf %216, %217 : vector<16x1xf32>
    %219 = vector.broadcast %211 : vector<16x1xf32> to vector<16x32xf32>
    %220 = arith.subf %203, %219 : vector<16x32xf32>
    %cst_84 = arith.constant 9.99999974E-6 : f32
    %221 = vector.broadcast %cst_84 : f32 to vector<16x1xf32>
    %222 = arith.addf %218, %221 : vector<16x1xf32>
    %223 = math.rsqrt %222 : vector<16x1xf32>
    %224 = vector.broadcast %223 : vector<16x1xf32> to vector<16x32xf32>
    %225 = arith.mulf %220, %224 : vector<16x32xf32>
    %226 = vector.broadcast %204 : vector<1x32xf32> to vector<16x32xf32>
    %227 = arith.mulf %225, %226 : vector<16x32xf32>
    %228 = vector.broadcast %205 : vector<1x32xf32> to vector<16x32xf32>
    %229 = arith.addf %227, %228 : vector<16x32xf32>
    %cst_85 = arith.constant dense<0.000000e+00> : vector<16x32xf32>
    %230 = tpu.matmul %229, %207, %cst_85 {dimension_numbers = #tpu.dot_dimension_numbers<[1], [0], [0], [1], [0, 0, 1, 1], [], []>} : vector<16x32xf32>, vector<32x32xf32>, vector<16x32xf32> -> vector<16x32xf32>
    %231 = vector.broadcast %206 : vector<1x32xf32> to vector<16x32xf32>
    %232 = arith.addf %230, %231 : vector<16x32xf32>
    %c0_86 = arith.constant 0 : index
    %c0_87 = arith.constant 0 : index
    %233 = vector.load %arg3[%c0_86, %c0_87] : memref<16x32xf32, #tpu.memory_space<vmem>>, vector<16x32xf32>
    tpu.vector_store %arg3[%c0_86, %c0_87], %232 {strides = array<i32>} : memref<16x32xf32, #tpu.memory_space<vmem>>, vector<16x32xf32>,
    return
  }
}

</mosaic_0001>

<llo_original>
// kernel: transformer_forward.1
$region0: #{transformer_forward.1}
  #allocation0 [shape = 'u32[]', space=smem, size = 0x4, offset = 0x4, fixed_abs, tag = 'smem constant byte address 0x4 - core index']
  #allocation1 [shape = 'u32[144,128]{1,0:T(1,128)}', space=vmem, size = 0x12000, scoped, tag = 'internal scratch']
  %s0 = inlined_call_operand.vmem [shape: f32[16,32], index: 0, kind: input, shape index: {}]
  %s1 = inlined_call_operand.vmem [shape: s32[3,16,1], index: 1, kind: input, shape index: {}]
  %s2 = inlined_call_operand.vmem [shape: f32[432,96], index: 2, kind: input, shape index: {}]
  %s3 = inlined_call_operand.vmem [shape: f32[16,32], index: 3, kind: output, shape index: {}]
  %s4 = sld [smem:[#allocation0]]
  $region22: #{transformer_forward.1} parent=0
    _
  %s6 = ssub.s32 1, %s4
  %s7 = scalar_select 0, %s6, %s4
  // Predicated region
  $region2: #{transformer_forward.1} parent=0 // pred_check
    _
  $region3: #{transformer_forward.1} parent=0 // pred_check_branch
    %9 = sbr.rel (0) target = $region5
  $region4: #{transformer_forward.1} parent=0 // pred_region
    _
  $region5: #{transformer_forward.1} parent=0 // pred_fallthru
    _
  // Predicated region
  $region6: #{transformer_forward.1} parent=0 // pred_check
    _
  $region7: #{transformer_forward.1} parent=0 // pred_check_branch
    %11 = sbr.rel (0) target = $region9
  $region8: #{transformer_forward.1} parent=0 // pred_region
    _
  $region9: #{transformer_forward.1} parent=0 // pred_fallthru
    _
  // Predicated region
  $region10: #{transformer_forward.1} parent=0 // pred_check
    _
  $region11: #{transformer_forward.1} parent=0 // pred_check_branch
    %13 = sbr.rel (0) target = $region13
  $region12: #{transformer_forward.1} parent=0 // pred_region
    _
  $region13: #{transformer_forward.1} parent=0 // pred_fallthru
    _
  %v14 = vlaneseq
  %v15 = vand.u32 %v14, 127
  %v16 = vld [vmem:[%s1] sm:$0xff]
  %v17 = vld [vmem:[%s1 + $0x8] sm:$0xff]
  %18 = vset.pattern.permute.xlu0 0
  %19 = vperm.xlu0 %18, %v16
  %v20 = vpop.permute.xlu0 %19
  %21 = vset.pattern.permute.xlu0 0
  %22 = vperm.xlu0 %21, %v17
  %v23 = vpop.permute.xlu0 %22
  %vm24 = vcmp.eq.s32.totalorder %v15, %v20
  %vm25 = vcmp.eq.s32.totalorder %v15, %v23
  %s26 = scalar_lea.vmem %s1, 16
  %v27 = vld [vmem:[%s26] sm:$0xff]
  %v28 = vld [vmem:[%s26 + $0x8] sm:$0xff]
  %29 = vset.pattern.permute.xlu0 0
  %30 = vperm.xlu0 %29, %v27
  %v31 = vpop.permute.xlu0 %30
  %32 = vset.pattern.permute.xlu0 0
  %33 = vperm.xlu0 %32, %v28
  %v34 = vpop.permute.xlu0 %33
  %vm35 = vcmp.eq.s32.totalorder %v15, %v31
  %vm36 = vcmp.eq.s32.totalorder %v15, %v34
  %vm37 = vmor %vm24, %vm35
  %vm38 = vmor %vm25, %vm36
  %s39 = scalar_lea.vmem %s1, 32
  %v40 = vld [vmem:[%s39] sm:$0xff]
  %v41 = vld [vmem:[%s39 + $0x8] sm:$0xff]
  %42 = vset.pattern.permute.xlu0 0
  %43 = vperm.xlu0 %42, %v40
  %v44 = vpop.permute.xlu0 %43
  %45 = vset.pattern.permute.xlu0 0
  %46 = vperm.xlu0 %45, %v41
  %v47 = vpop.permute.xlu0 %46
  %vm48 = vcmp.eq.s32.totalorder %v15, %v44
  %vm49 = vcmp.eq.s32.totalorder %v15, %v47
  %vm50 = vmor %vm37, %vm48
  %vm51 = vmor %vm38, %vm49
  %v52 = vsel %vm50, 1, 0
  %v53 = vsel %vm51, 1, 0
  %v54 = vcvt.s32.f32 %v52
  %v55 = vcvt.s32.f32 %v53
  %v56 = vld [vmem:[%s2 + $0x178] sm:$0xff]
  %v57 = vld [vmem:[%s2 + $0x180] sm:$0xff]
  %v58 = vld [vmem:[%s2 + $0x188] sm:$0xff]
  %v59 = vld [vmem:[%s2 + $0x190] sm:$0xff]
  %v60 = vld [vmem:[%s2 + $0x198] sm:$0xff]
  %v61 = vld [vmem:[%s0] sm:$0xff]
  %v62 = vld [vmem:[%s0 + $0x8] sm:$0xff]
  %vm63 = vcmask 195584
  %v65 = vsel %vm63, %v54, 0
  %v68 = vsel %vm63, %v55, 0
  %70 = vmatprep.subr.mxu0 0.0
  %71 = vmatpush1.msra.mxu0 %v56
  %72 = vmatprep.subr.mxu0 0.0
  %73 = vmatpush1.msra.mxu0 %v57
  %74 = vmatprep.subr.mxu0 0.0
  %75 = vmatpush1.msra.mxu0 %v58
  %76 = vmatprep.subr.mxu0 0.0
  %77 = vmatpush1.msra.mxu0 0.0
  %78 = vmatprep.subr.mxu0 0.0
  %79 = vmatpush1.msra.mxu0 0.0
  %80 = vmatprep.subr.mxu0 0.0
  %81 = vmatpush1.msra.mxu0 0.0
  %82 = vmatprep.subr.mxu0 0.0
  %83 = vmatpush1.msra.mxu0 0.0
  %84 = vmatprep.subr.mxu0 0.0
  %85 = vmatpush1.msra.mxu0 0.0
  %86 = vmatprep.subr.mxu0 0.0
  %87 = vmatpush1.msra.mxu0 0.0
  %88 = vmatprep.subr.mxu0 0.0
  %89 = vmatpush1.msra.mxu0 0.0
  %90 = vmatprep.subr.mxu0 0.0
  %91 = vmatpush1.msra.mxu0 0.0
  %92 = vmatprep.subr.mxu0 0.0
  %93 = vmatpush1.msra.mxu0 0.0
  %94 = vmatprep.subr.mxu0 0.0
  %95 = vmatpush1.msra.mxu0 0.0
  %96 = vmatprep.subr.mxu0 0.0
  %97 = vmatpush1.msra.mxu0 0.0
  %98 = vmatprep.subr.mxu0 0.0
  %99 = vmatpush1.msra.mxu0 0.0
  %100 = vmatprep.subr.mxu0 0.0
  %101 = vmatpush1.msra.mxu0 0.0
  %102 = vmatprep.subr.mxu0 0.0
  %103 = vmatpush1.msra.mxu0 0.0
  %104 = vmatprep.subr.mxu0 0.0
  %105 = vmatpush1.msra.mxu0 0.0
  %106 = vmatprep.subr.mxu0 0.0
  %107 = vmatpush1.msra.mxu0 0.0
  %108 = vmatprep.subr.mxu0 0.0
  %109 = vmatpush1.msra.mxu0 0.0
  %110 = vmatprep.subr.mxu0 0.0
  %111 = vmatpush1.msra.mxu0 0.0
  %112 = vmatprep.subr.mxu0 0.0
  %113 = vmatpush1.msra.mxu0 0.0
  %114 = vmatprep.subr.mxu0 0.0
  %115 = vmatpush1.msra.mxu0 0.0
  %116 = vmatprep.subr.mxu0 0.0
  %117 = vmatpush1.msra.mxu0 0.0
  %118 = vmatprep.subr.mxu0 0.0
  %119 = vmatpush1.msra.mxu0 0.0
  %120 = vmatprep.subr.mxu0 0.0
  %121 = vmatpush1.msra.mxu0 0.0
  %122 = vmatprep.subr.mxu0 0.0
  %123 = vmatpush1.msra.mxu0 0.0
  %124 = vmatprep.subr.mxu0 0.0
  %125 = vmatpush1.msra.mxu0 0.0
  %126 = vmatprep.subr.mxu0 0.0
  %127 = vmatpush1.msra.mxu0 0.0
  %128 = vmatprep.subr.mxu0 0.0
  %129 = vmatpush1.msra.mxu0 0.0
  %130 = vmatprep.subr.mxu0 0.0
  %131 = vmatpush1.msra.mxu0 0.0
  %132 = vmatprep.subr.mxu0 0.0
  %133 = vmatpush1.msra.mxu0 0.0
  %134 = vmatprep.mubr.f32.mxu0 0.0
  %135 = vmatmul.mubr.f32.gmra.mrb[0].mxu0 %v65
  %v136 = vpop.f32.mrb[0].mxu0
  %v137 = vadd.f32 %v61, %v136
  %v138 = vpop.f32.mrb[0].mxu0
  %139 = vmatprep.mubr.f32.mxu0 0.0
  %140 = vmatmul.mubr.f32.gmra.mrb[0].mxu0 %v68
  %v141 = vpop.f32.mrb[0].mxu0
  %v142 = vadd.f32 %v62, %v141
  %v143 = vpop.f32.mrb[0].mxu0
  %144 = vdwg.mxu0
  %v145 = vadd.f32 %v137, %v59
  %v146 = vadd.f32 %v142, %v60
  %v147 = vld [vmem:[%s2 + $0x1a0] sm:$0xff]
  %v148 = vld [vmem:[%s2 + $0x1a8] sm:$0xff]
  %v149 = vld [vmem:[%s2] sm:$0xff]
  %v150 = vld [vmem:[%s2 + $0x8] sm:$0xff]
  %v151 = vld [vmem:[%s2 + $0x10] sm:$0xff]
  %v152 = vld [vmem:[%s2 + $0x18] sm:$0xff]
  %v153 = vld [vmem:[%s2 + $0x20] sm:$0xff]
  %v154 = vld [vmem:[%s2 + $0x28] sm:$0xff]
  %v155 = vld [vmem:[%s2 + $0x30] sm:$0xff]
  %v156 = vld [vmem:[%s2 + $0x38] sm:$0xff]
  %v157 = vld [vmem:[%s2 + $0x40] sm:$0xff]
  %v158 = vld [vmem:[%s2 + $0x48] sm:$0xff]
  %v159 = vld [vmem:[%s2 + $0x50] sm:$0xff]
  %v160 = vld [vmem:[%s2 + $0x58] sm:$0xff]
  %v161 = vld [vmem:[%s2 + $0x60] sm:$0xff]
  %v162 = vld [vmem:[%s2 + $0x68] sm:$0xff]
  %v163 = vld [vmem:[%s2 + $0x70] sm:$0xff]
  %v164 = vld [vmem:[%s2 + $0x78] sm:$0xff]
  %v165 = vld [vmem:[%s2 + $0x80] sm:$0xff]
  %v166 = vld [vmem:[%s2 + $0x88] sm:$0xff]
  %v167 = vld [vmem:[%s2 + $0x90] sm:$0xff]
  %v168 = vld [vmem:[%s2 + $0x98] sm:$0xff]
  %v169 = vld [vmem:[%s2 + $0xa0] sm:$0x1]
  %v170 = vld [vmem:[%s2 + $0xa1] sm:$0x1]
  %v171 = vld [vmem:[%s2 + $0xa2] sm:$0x1]
  %v172 = vld [vmem:[%s2 + $0xa3] sm:$0x1]
  %v173 = vld [vmem:[%s2 + $0xa4] sm:$0x1]
  %v174 = vld [vmem:[%s2 + $0xa5] sm:$0x1]
  %v175 = vld [vmem:[%s2 + $0xa6] sm:$0x1]
  %v176 = vld [vmem:[%s2 + $0xa7] sm:$0x1]
  %v177 = vlaneseq
  %v178 = vshrl.u32 %v177, 7
  %v179 = vsub.s32 0, %v178
  %v180 = vrot.slane %v169, %v179
  %vm181 = vcmask 261120
  %v183 = vsel %vm181, %v145, 0
  %v186 = vsel %vm181, %v146, 0
  %188 = vmatprep.subr.mxu0 0.0
  %189 = vmatpush1.msra.mxu0 %v149
  %190 = vmatprep.subr.mxu0 0.0
  %191 = vmatpush1.msra.mxu0 %v150
  %192 = vmatprep.subr.mxu0 0.0
  %193 = vmatpush1.msra.mxu0 %v151
  %194 = vmatprep.subr.mxu0 0.0
  %195 = vmatpush1.msra.mxu0 %v152
  %196 = vmatprep.subr.mxu0 0.0
  %197 = vmatpush1.msra.mxu0 0.0
  %198 = vmatprep.subr.mxu0 0.0
  %199 = vmatpush1.msra.mxu0 0.0
  %200 = vmatprep.subr.mxu0 0.0
  %201 = vmatpush1.msra.mxu0 0.0
  %202 = vmatprep.subr.mxu0 0.0
  %203 = vmatpush1.msra.mxu0 0.0
  %204 = vmatprep.subr.mxu0 0.0
  %205 = vmatpush1.msra.mxu0 0.0
  %206 = vmatprep.subr.mxu0 0.0
  %207 = vmatpush1.msra.mxu0 0.0
  %208 = vmatprep.subr.mxu0 0.0
  %209 = vmatpush1.msra.mxu0 0.0
  %210 = vmatprep.subr.mxu0 0.0
  %211 = vmatpush1.msra.mxu0 0.0
  %212 = vmatprep.subr.mxu0 0.0
  %213 = vmatpush1.msra.mxu0 0.0
  %214 = vmatprep.subr.mxu0 0.0
  %215 = vmatpush1.msra.mxu0 0.0
  %216 = vmatprep.subr.mxu0 0.0
  %217 = vmatpush1.msra.mxu0 0.0
  %218 = vmatprep.subr.mxu0 0.0
  %219 = vmatpush1.msra.mxu0 0.0
  %220 = vmatprep.subr.mxu0 0.0
  %221 = vmatpush1.msra.mxu0 0.0
  %222 = vmatprep.subr.mxu0 0.0
  %223 = vmatpush1.msra.mxu0 0.0
  %224 = vmatprep.subr.mxu0 0.0
  %225 = vmatpush1.msra.mxu0 0.0
  %226 = vmatprep.subr.mxu0 0.0
  %227 = vmatpush1.msra.mxu0 0.0
  %228 = vmatprep.subr.mxu0 0.0
  %229 = vmatpush1.msra.mxu0 0.0
  %230 = vmatprep.subr.mxu0 0.0
  %231 = vmatpush1.msra.mxu0 0.0
  %232 = vmatprep.subr.mxu0 0.0
  %233 = vmatpush1.msra.mxu0 0.0
  %234 = vmatprep.subr.mxu0 0.0
  %235 = vmatpush1.msra.mxu0 0.0
  %236 = vmatprep.subr.mxu0 0.0
  %237 = vmatpush1.msra.mxu0 0.0
  %238 = vmatprep.subr.mxu0 0.0
  %239 = vmatpush1.msra.mxu0 0.0
  %240 = vmatprep.subr.mxu0 0.0
  %241 = vmatpush1.msra.mxu0 0.0
  %242 = vmatprep.subr.mxu0 0.0
  %243 = vmatpush1.msra.mxu0 0.0
  %244 = vmatprep.subr.mxu0 0.0
  %245 = vmatpush1.msra.mxu0 0.0
  %246 = vmatprep.subr.mxu0 0.0
  %247 = vmatpush1.msra.mxu0 0.0
  %248 = vmatprep.subr.mxu0 0.0
  %249 = vmatpush1.msra.mxu0 0.0
  %250 = vmatprep.subr.mxu0 0.0
  %251 = vmatpush1.msra.mxu0 0.0
  %252 = vmatprep.mubr.f32.mxu0 0.0
  %253 = vmatmul.mubr.f32.gmra.mrb[0].mxu0 %v183
  %v254 = vpop.f32.mrb[0].mxu0
  %v255 = vadd.f32 %v180, %v254
  %v256 = vpop.f32.mrb[0].mxu0
  %257 = vmatprep.mubr.f32.mxu0 0.0
  %258 = vmatmul.mubr.f32.gmra.mrb[0].mxu0 %v186
  %v259 = vpop.f32.mrb[0].mxu0
  %v260 = vadd.f32 %v180, %v259
  %v261 = vpop.f32.mrb[0].mxu0
  %262 = vdwg.mxu0
  %265 = vrot.lane.b32.xlu0 %v255, 96
  %v266 = vpop.permute.xlu0 %265
  %267 = vrot.lane.b32.xlu0 %v260, 96
  %v268 = vpop.permute.xlu0 %267
  %v269 = vsel %vm181, %v255, 0
  %v271 = vsel %vm181, %v260, 0
  %v273 = vsel %vm181, %v266, 0
  %v275 = vsel %vm181, %v268, 0
  %277 = vmatprep.subr.mxu0 0.0
  %278 = vmatpush1.xpose.msra.mxu0 %v273
  %279 = vmatprep.subr.mxu0 0.0
  %280 = vmatpush1.xpose.msra.mxu0 %v275
  %281 = vmatprep.subr.mxu0 0.0
  %282 = vmatpush1.xpose.msra.mxu0 0.0
  %283 = vmatprep.subr.mxu0 0.0
  %284 = vmatpush1.xpose.msra.mxu0 0.0
  %285 = vmatprep.subr.mxu0 0.0
  %286 = vmatpush1.xpose.msra.mxu0 0.0
  %287 = vmatprep.subr.mxu0 0.0
  %288 = vmatpush1.xpose.msra.mxu0 0.0
  %289 = vmatprep.subr.mxu0 0.0
  %290 = vmatpush1.xpose.msra.mxu0 0.0
  %291 = vmatprep.subr.mxu0 0.0
  %292 = vmatpush1.xpose.msra.mxu0 0.0
  %293 = vmatprep.subr.mxu0 0.0
  %294 = vmatpush1.xpose.msra.mxu0 0.0
  %295 = vmatprep.subr.mxu0 0.0
  %296 = vmatpush1.xpose.msra.mxu0 0.0
  %297 = vmatprep.subr.mxu0 0.0
  %298 = vmatpush1.xpose.msra.mxu0 0.0
  %299 = vmatprep.subr.mxu0 0.0
  %300 = vmatpush1.xpose.msra.mxu0 0.0
  %301 = vmatprep.subr.mxu0 0.0
  %302 = vmatpush1.xpose.msra.mxu0 0.0
  %303 = vmatprep.subr.mxu0 0.0
  %304 = vmatpush1.xpose.msra.mxu0 0.0
  %305 = vmatprep.subr.mxu0 0.0
  %306 = vmatpush1.xpose.msra.mxu0 0.0
  %307 = vmatprep.subr.mxu0 0.0
  %308 = vmatpush1.xpose.msra.mxu0 0.0
  %309 = vmatprep.subr.mxu0 0.0
  %310 = vmatpush1.xpose.msra.mxu0 0.0
  %311 = vmatprep.subr.mxu0 0.0
  %312 = vmatpush1.xpose.msra.mxu0 0.0
  %313 = vmatprep.subr.mxu0 0.0
  %314 = vmatpush1.xpose.msra.mxu0 0.0
  %315 = vmatprep.subr.mxu0 0.0
  %316 = vmatpush1.xpose.msra.mxu0 0.0
  %317 = vmatprep.subr.mxu0 0.0
  %318 = vmatpush1.xpose.msra.mxu0 0.0
  %319 = vmatprep.subr.mxu0 0.0
  %320 = vmatpush1.xpose.msra.mxu0 0.0
  %321 = vmatprep.subr.mxu0 0.0
  %322 = vmatpush1.xpose.msra.mxu0 0.0
  %323 = vmatprep.subr.mxu0 0.0
  %324 = vmatpush1.xpose.msra.mxu0 0.0
  %325 = vmatprep.subr.mxu0 0.0
  %326 = vmatpush1.xpose.msra.mxu0 0.0
  %327 = vmatprep.subr.mxu0 0.0
  %328 = vmatpush1.xpose.msra.mxu0 0.0
  %329 = vmatprep.subr.mxu0 0.0
  %330 = vmatpush1.xpose.msra.mxu0 0.0
  %331 = vmatprep.subr.mxu0 0.0
  %332 = vmatpush1.xpose.msra.mxu0 0.0
  %333 = vmatprep.subr.mxu0 0.0
  %334 = vmatpush1.xpose.msra.mxu0 0.0
  %335 = vmatprep.subr.mxu0 0.0
  %336 = vmatpush1.xpose.msra.mxu0 0.0
  %337 = vmatprep.subr.mxu0 0.0
  %338 = vmatpush1.xpose.msra.mxu0 0.0
  %339 = vmatprep.subr.mxu0 0.0
  %340 = vmatpush1.xpose.msra.mxu0 0.0
  %341 = vmatprep.mubr.f32.mxu0 0.0
  %342 = vmatmul.mubr.f32.gmra.mrb[0].mxu0 %v269
  %v343 = vpop.f32.mrb[0].mxu0
  %v344 = vadd.f32 0.0, %v343
  %v345 = vpop.f32.mrb[0].mxu0
  %346 = vmatprep.mubr.f32.mxu0 0.0
  %347 = vmatmul.mubr.f32.gmra.mrb[0].mxu0 %v271
  %v348 = vpop.f32.mrb[0].mxu0
  %v349 = vadd.f32 0.0, %v348
  %v350 = vpop.f32.mrb[0].mxu0
  %351 = vdwg.mxu0
  %v352 = vmul.f32 %v344, 0.17677669
  %v353 = vmul.f32 %v349, 0.17677669
  %v354 = vadd.f32 %v352, %v147
  %v355 = vadd.f32 %v353, %v148
  %vm356 = vcmask 130048
  %v357 = vsel %vm356, %v354, -inf
  %358 = vmax.xlane.f32.xlu0 %v357
  %v359 = vpop.xlane.xlu0 %358
  %v360 = vsel %vm356, %v355, -inf
  %361 = vmax.xlane.f32.xlu0 %v360
  %v362 = vpop.xlane.xlu0 %361
  %v363 = vsub.f32 %v354, %v359
  %v364 = vsub.f32 %v355, %v362
  %v365 = vmul.f32 %v363, 1.442695
  %v366 = vpow.pop %v365
  %v367 = vmul.f32 %v364, 1.442695
  %v368 = vpow.pop %v367
  %v369 = vsel %vm356, %v366, 0.0
  %370 = vadd.xlane.f32.xlu0 %v369
  %v371 = vpop.xlane.xlu0 %370
  %v372 = vsel %vm356, %v368, 0.0
  %373 = vadd.xlane.f32.xlu0 %v372
  %v374 = vpop.xlane.xlu0 %373
  %v375 = vrcp.pop %v371
  %v376 = vrcp.pop %v374
  %v377 = vmul.f32 %v366, %v375
  %v378 = vmul.f32 %v368, %v376
  %379 = vrot.lane.b32.xlu0 %v255, 64
  %v380 = vpop.permute.xlu0 %379
  %381 = vrot.lane.b32.xlu0 %v260, 64
  %v382 = vpop.permute.xlu0 %381
  %v386 = vsel %vm356, %v377, 0
  %v389 = vsel %vm356, %v378, 0
  %391 = vmatprep.subr.mxu0 0.0
  %392 = vmatpush1.msra.mxu0 %v380
  %393 = vmatprep.subr.mxu0 0.0
  %394 = vmatpush1.msra.mxu0 %v382
  %395 = vmatprep.subr.mxu0 0.0
  %396 = vmatpush1.msra.mxu0 0.0
  %397 = vmatprep.subr.mxu0 0.0
  %398 = vmatpush1.msra.mxu0 0.0
  %399 = vmatprep.subr.mxu0 0.0
  %400 = vmatpush1.msra.mxu0 0.0
  %401 = vmatprep.subr.mxu0 0.0
  %402 = vmatpush1.msra.mxu0 0.0
  %403 = vmatprep.subr.mxu0 0.0
  %404 = vmatpush1.msra.mxu0 0.0
  %405 = vmatprep.subr.mxu0 0.0
  %406 = vmatpush1.msra.mxu0 0.0
  %407 = vmatprep.subr.mxu0 0.0
  %408 = vmatpush1.msra.mxu0 0.0
  %409 = vmatprep.subr.mxu0 0.0
  %410 = vmatpush1.msra.mxu0 0.0
  %411 = vmatprep.subr.mxu0 0.0
  %412 = vmatpush1.msra.mxu0 0.0
  %413 = vmatprep.subr.mxu0 0.0
  %414 = vmatpush1.msra.mxu0 0.0
  %415 = vmatprep.subr.mxu0 0.0
  %416 = vmatpush1.msra.mxu0 0.0
  %417 = vmatprep.subr.mxu0 0.0
  %418 = vmatpush1.msra.mxu0 0.0
  %419 = vmatprep.subr.mxu0 0.0
  %420 = vmatpush1.msra.mxu0 0.0
  %421 = vmatprep.subr.mxu0 0.0
  %422 = vmatpush1.msra.mxu0 0.0
  %423 = vmatprep.subr.mxu0 0.0
  %424 = vmatpush1.msra.mxu0 0.0
  %425 = vmatprep.subr.mxu0 0.0
  %426 = vmatpush1.msra.mxu0 0.0
  %427 = vmatprep.subr.mxu0 0.0
  %428 = vmatpush1.msra.mxu0 0.0
  %429 = vmatprep.subr.mxu0 0.0
  %430 = vmatpush1.msra.mxu0 0.0
  %431 = vmatprep.subr.mxu0 0.0
  %432 = vmatpush1.msra.mxu0 0.0
  %433 = vmatprep.subr.mxu0 0.0
  %434 = vmatpush1.msra.mxu0 0.0
  %435 = vmatprep.subr.mxu0 0.0
  %436 = vmatpush1.msra.mxu0 0.0
  %437 = vmatprep.subr.mxu0 0.0
  %438 = vmatpush1.msra.mxu0 0.0
  %439 = vmatprep.subr.mxu0 0.0
  %440 = vmatpush1.msra.mxu0 0.0
  %441 = vmatprep.subr.mxu0 0.0
  %442 = vmatpush1.msra.mxu0 0.0
  %443 = vmatprep.subr.mxu0 0.0
  %444 = vmatpush1.msra.mxu0 0.0
  %445 = vmatprep.subr.mxu0 0.0
  %446 = vmatpush1.msra.mxu0 0.0
  %447 = vmatprep.subr.mxu0 0.0
  %448 = vmatpush1.msra.mxu0 0.0
  %449 = vmatprep.subr.mxu0 0.0
  %450 = vmatpush1.msra.mxu0 0.0
  %451 = vmatprep.subr.mxu0 0.0
  %452 = vmatpush1.msra.mxu0 0.0
  %453 = vmatprep.subr.mxu0 0.0
  %454 = vmatpush1.msra.mxu0 0.0
  %455 = vmatprep.mubr.f32.mxu0 0.0
  %456 = vmatmul.mubr.f32.gmra.mrb[0].mxu0 %v386
  %v457 = vpop.f32.mrb[0].mxu0
  %v458 = vadd.f32 0.0, %v457
  %v459 = vpop.f32.mrb[0].mxu0
  %460 = vmatprep.mubr.f32.mxu0 0.0
  %461 = vmatmul.mubr.f32.gmra.mrb[0].mxu0 %v389
  %v462 = vpop.f32.mrb[0].mxu0
  %v463 = vadd.f32 0.0, %v462
  %v464 = vpop.f32.mrb[0].mxu0
  %465 = vdwg.mxu0
  %v466 = vlaneseq
  %v467 = vshrl.u32 %v466, 7
  %v468 = vsub.s32 0, %v467
  %v469 = vrot.slane %v170, %v468
  %v471 = vsel %vm181, %v458, 0
  %v474 = vsel %vm181, %v463, 0
  %476 = vmatprep.subr.mxu0 0.0
  %477 = vmatpush1.msra.mxu0 %v153
  %478 = vmatprep.subr.mxu0 0.0
  %479 = vmatpush1.msra.mxu0 %v154
  %480 = vmatprep.subr.mxu0 0.0
  %481 = vmatpush1.msra.mxu0 %v155
  %482 = vmatprep.subr.mxu0 0.0
  %483 = vmatpush1.msra.mxu0 %v156
  %484 = vmatprep.subr.mxu0 0.0
  %485 = vmatpush1.msra.mxu0 0.0
  %486 = vmatprep.subr.mxu0 0.0
  %487 = vmatpush1.msra.mxu0 0.0
  %488 = vmatprep.subr.mxu0 0.0
  %489 = vmatpush1.msra.mxu0 0.0
  %490 = vmatprep.subr.mxu0 0.0
  %491 = vmatpush1.msra.mxu0 0.0
  %492 = vmatprep.subr.mxu0 0.0
  %493 = vmatpush1.msra.mxu0 0.0
  %494 = vmatprep.subr.mxu0 0.0
  %495 = vmatpush1.msra.mxu0 0.0
  %496 = vmatprep.subr.mxu0 0.0
  %497 = vmatpush1.msra.mxu0 0.0
  %498 = vmatprep.subr.mxu0 0.0
  %499 = vmatpush1.msra.mxu0 0.0
  %500 = vmatprep.subr.mxu0 0.0
  %501 = vmatpush1.msra.mxu0 0.0
  %502 = vmatprep.subr.mxu0 0.0
  %503 = vmatpush1.msra.mxu0 0.0
  %504 = vmatprep.subr.mxu0 0.0
  %505 = vmatpush1.msra.mxu0 0.0
  %506 = vmatprep.subr.mxu0 0.0
  %507 = vmatpush1.msra.mxu0 0.0
  %508 = vmatprep.subr.mxu0 0.0
  %509 = vmatpush1.msra.mxu0 0.0
  %510 = vmatprep.subr.mxu0 0.0
  %511 = vmatpush1.msra.mxu0 0.0
  %512 = vmatprep.subr.mxu0 0.0
  %513 = vmatpush1.msra.mxu0 0.0
  %514 = vmatprep.subr.mxu0 0.0
  %515 = vmatpush1.msra.mxu0 0.0
  %516 = vmatprep.subr.mxu0 0.0
  %517 = vmatpush1.msra.mxu0 0.0
  %518 = vmatprep.subr.mxu0 0.0
  %519 = vmatpush1.msra.mxu0 0.0
  %520 = vmatprep.subr.mxu0 0.0
  %521 = vmatpush1.msra.mxu0 0.0
  %522 = vmatprep.subr.mxu0 0.0
  %523 = vmatpush1.msra.mxu0 0.0
  %524 = vmatprep.subr.mxu0 0.0
  %525 = vmatpush1.msra.mxu0 0.0
  %526 = vmatprep.subr.mxu0 0.0
  %527 = vmatpush1.msra.mxu0 0.0
  %528 = vmatprep.subr.mxu0 0.0
  %529 = vmatpush1.msra.mxu0 0.0
  %530 = vmatprep.subr.mxu0 0.0
  %531 = vmatpush1.msra.mxu0 0.0
  %532 = vmatprep.subr.mxu0 0.0
  %533 = vmatpush1.msra.mxu0 0.0
  %534 = vmatprep.subr.mxu0 0.0
  %535 = vmatpush1.msra.mxu0 0.0
  %536 = vmatprep.subr.mxu0 0.0
  %537 = vmatpush1.msra.mxu0 0.0
  %538 = vmatprep.subr.mxu0 0.0
  %539 = vmatpush1.msra.mxu0 0.0
  %540 = vmatprep.mubr.f32.mxu0 0.0
  %541 = vmatmul.mubr.f32.gmra.mrb[0].mxu0 %v471
  %v542 = vpop.f32.mrb[0].mxu0
  %v543 = vadd.f32 %v469, %v542
  %v544 = vpop.f32.mrb[0].mxu0
  %545 = vmatprep.mubr.f32.mxu0 0.0
  %546 = vmatmul.mubr.f32.gmra.mrb[0].mxu0 %v474
  %v547 = vpop.f32.mrb[0].mxu0
  %v548 = vadd.f32 %v469, %v547
  %v549 = vpop.f32.mrb[0].mxu0
  %550 = vdwg.mxu0
  %v551 = vadd.f32 %v145, %v543
  %v552 = vadd.f32 %v146, %v548
  %v553 = vsel %vm181, %v551, 0.0
  %554 = vadd.xlane.f32.xlu0 %v553
  %v555 = vpop.xlane.xlu0 %554
  %v556 = vsel %vm181, %v552, 0.0
  %557 = vadd.xlane.f32.xlu0 %v556
  %v558 = vpop.xlane.xlu0 %557
  %v559 = vrcp.pop 32.0
  %v560 = vmul.f32 %v555, %v559
  %v561 = vmul.f32 %v558, %v559
  %v562 = vsub.f32 %v551, %v560
  %v563 = vsub.f32 %v552, %v561
  %v564 = vmul.f32 %v562, %v562
  %v565 = vmul.f32 %v563, %v563
  %v566 = vsel %vm181, %v564, 0.0
  %567 = vadd.xlane.f32.xlu0 %v566
  %v568 = vpop.xlane.xlu0 %567
  %v569 = vsel %vm181, %v565, 0.0
  %570 = vadd.xlane.f32.xlu0 %v569
  %v571 = vpop.xlane.xlu0 %570
  %v572 = vmul.f32 %v568, %v559
  %v573 = vmul.f32 %v571, %v559
  %v574 = vadd.f32 %v572, 1e-05
  %v575 = vadd.f32 %v573, 1e-05
  %v576 = vrsqrt.pop %v574
  %v577 = vrsqrt.pop %v575
  %v578 = vmul.f32 %v562, %v576
  %v579 = vmul.f32 %v563, %v577
  %v580 = vlaneseq
  %v581 = vshrl.u32 %v580, 7
  %v582 = vsub.s32 0, %v581
  %v583 = vrot.slane %v171, %v582
  %v584 = vmul.f32 %v578, %v583
  %v585 = vmul.f32 %v579, %v583
  %v586 = vlaneseq
  %v587 = vshrl.u32 %v586, 7
  %v588 = vsub.s32 0, %v587
  %v589 = vrot.slane %v172, %v588
  %v590 = vadd.f32 %v584, %v589
  %v591 = vadd.f32 %v585, %v589
  %v592 = vlaneseq
  %v593 = vshrl.u32 %v592, 7
  %v594 = vsub.s32 0, %v593
  %v595 = vrot.slane %v173, %v594
  %v597 = vsel %vm181, %v590, 0
  %v600 = vsel %vm181, %v591, 0
  %602 = vmatprep.subr.mxu0 0.0
  %603 = vmatpush1.msra.mxu0 %v157
  %604 = vmatprep.subr.mxu0 0.0
  %605 = vmatpush1.msra.mxu0 %v158
  %606 = vmatprep.subr.mxu0 0.0
  %607 = vmatpush1.msra.mxu0 %v159
  %608 = vmatprep.subr.mxu0 0.0
  %609 = vmatpush1.msra.mxu0 %v160
  %610 = vmatprep.subr.mxu0 0.0
  %611 = vmatpush1.msra.mxu0 0.0
  %612 = vmatprep.subr.mxu0 0.0
  %613 = vmatpush1.msra.mxu0 0.0
  %614 = vmatprep.subr.mxu0 0.0
  %615 = vmatpush1.msra.mxu0 0.0
  %616 = vmatprep.subr.mxu0 0.0
  %617 = vmatpush1.msra.mxu0 0.0
  %618 = vmatprep.subr.mxu0 0.0
  %619 = vmatpush1.msra.mxu0 0.0
  %620 = vmatprep.subr.mxu0 0.0
  %621 = vmatpush1.msra.mxu0 0.0
  %622 = vmatprep.subr.mxu0 0.0
  %623 = vmatpush1.msra.mxu0 0.0
  %624 = vmatprep.subr.mxu0 0.0
  %625 = vmatpush1.msra.mxu0 0.0
  %626 = vmatprep.subr.mxu0 0.0
  %627 = vmatpush1.msra.mxu0 0.0
  %628 = vmatprep.subr.mxu0 0.0
  %629 = vmatpush1.msra.mxu0 0.0
  %630 = vmatprep.subr.mxu0 0.0
  %631 = vmatpush1.msra.mxu0 0.0
  %632 = vmatprep.subr.mxu0 0.0
  %633 = vmatpush1.msra.mxu0 0.0
  %634 = vmatprep.subr.mxu0 0.0
  %635 = vmatpush1.msra.mxu0 0.0
  %636 = vmatprep.subr.mxu0 0.0
  %637 = vmatpush1.msra.mxu0 0.0
  %638 = vmatprep.subr.mxu0 0.0
  %639 = vmatpush1.msra.mxu0 0.0
  %640 = vmatprep.subr.mxu0 0.0
  %641 = vmatpush1.msra.mxu0 0.0
  %642 = vmatprep.subr.mxu0 0.0
  %643 = vmatpush1.msra.mxu0 0.0
  %644 = vmatprep.subr.mxu0 0.0
  %645 = vmatpush1.msra.mxu0 0.0
  %646 = vmatprep.subr.mxu0 0.0
  %647 = vmatpush1.msra.mxu0 0.0
  %648 = vmatprep.subr.mxu0 0.0
  %649 = vmatpush1.msra.mxu0 0.0
  %650 = vmatprep.subr.mxu0 0.0
  %651 = vmatpush1.msra.mxu0 0.0
  %652 = vmatprep.subr.mxu0 0.0
  %653 = vmatpush1.msra.mxu0 0.0
  %654 = vmatprep.subr.mxu0 0.0
  %655 = vmatpush1.msra.mxu0 0.0
  %656 = vmatprep.subr.mxu0 0.0
  %657 = vmatpush1.msra.mxu0 0.0
  %658 = vmatprep.subr.mxu0 0.0
  %659 = vmatpush1.msra.mxu0 0.0
  %660 = vmatprep.subr.mxu0 0.0
  %661 = vmatpush1.msra.mxu0 0.0
  %662 = vmatprep.subr.mxu0 0.0
  %663 = vmatpush1.msra.mxu0 0.0
  %664 = vmatprep.subr.mxu0 0.0
  %665 = vmatpush1.msra.mxu0 0.0
  %666 = vmatprep.mubr.f32.mxu0 0.0
  %667 = vmatmul.mubr.f32.gmra.mrb[0].mxu0 %v597
  %v668 = vpop.f32.mrb[0].mxu0
  %v669 = vadd.f32 %v595, %v668
  %v670 = vpop.f32.mrb[0].mxu0
  %671 = vmatprep.mubr.f32.mxu0 0.0
  %672 = vmatmul.mubr.f32.gmra.mrb[0].mxu0 %v600
  %v673 = vpop.f32.mrb[0].mxu0
  %v674 = vadd.f32 %v595, %v673
  %v675 = vpop.f32.mrb[0].mxu0
  %676 = vdwg.mxu0
  %v677 = vmax.f32 %v669, 0.0
  %v678 = vmax.f32 %v674, 0.0
  %v679 = vlaneseq
  %v680 = vshrl.u32 %v679, 7
  %v681 = vsub.s32 0, %v680
  %v682 = vrot.slane %v174, %v681
  %vm683 = vcmask 523264
  %v685 = vsel %vm683, %v677, 0
  %v688 = vsel %vm683, %v678, 0
  %690 = vmatprep.subr.mxu0 0.0
  %691 = vmatpush1.msra.mxu0 %v161
  %692 = vmatprep.subr.mxu0 0.0
  %693 = vmatpush1.msra.mxu0 %v162
  %694 = vmatprep.subr.mxu0 0.0
  %695 = vmatpush1.msra.mxu0 %v163
  %696 = vmatprep.subr.mxu0 0.0
  %697 = vmatpush1.msra.mxu0 %v164
  %698 = vmatprep.subr.mxu0 0.0
  %699 = vmatpush1.msra.mxu0 %v165
  %700 = vmatprep.subr.mxu0 0.0
  %701 = vmatpush1.msra.mxu0 %v166
  %702 = vmatprep.subr.mxu0 0.0
  %703 = vmatpush1.msra.mxu0 %v167
  %704 = vmatprep.subr.mxu0 0.0
  %705 = vmatpush1.msra.mxu0 %v168
  %706 = vmatprep.subr.mxu0 0.0
  %707 = vmatpush1.msra.mxu0 0.0
  %708 = vmatprep.subr.mxu0 0.0
  %709 = vmatpush1.msra.mxu0 0.0
  %710 = vmatprep.subr.mxu0 0.0
  %711 = vmatpush1.msra.mxu0 0.0
  %712 = vmatprep.subr.mxu0 0.0
  %713 = vmatpush1.msra.mxu0 0.0
  %714 = vmatprep.subr.mxu0 0.0
  %715 = vmatpush1.msra.mxu0 0.0
  %716 = vmatprep.subr.mxu0 0.0
  %717 = vmatpush1.msra.mxu0 0.0
  %718 = vmatprep.subr.mxu0 0.0
  %719 = vmatpush1.msra.mxu0 0.0
  %720 = vmatprep.subr.mxu0 0.0
  %721 = vmatpush1.msra.mxu0 0.0
  %722 = vmatprep.subr.mxu0 0.0
  %723 = vmatpush1.msra.mxu0 0.0
  %724 = vmatprep.subr.mxu0 0.0
  %725 = vmatpush1.msra.mxu0 0.0
  %726 = vmatprep.subr.mxu0 0.0
  %727 = vmatpush1.msra.mxu0 0.0
  %728 = vmatprep.subr.mxu0 0.0
  %729 = vmatpush1.msra.mxu0 0.0
  %730 = vmatprep.subr.mxu0 0.0
  %731 = vmatpush1.msra.mxu0 0.0
  %732 = vmatprep.subr.mxu0 0.0
  %733 = vmatpush1.msra.mxu0 0.0
  %734 = vmatprep.subr.mxu0 0.0
  %735 = vmatpush1.msra.mxu0 0.0
  %736 = vmatprep.subr.mxu0 0.0
  %737 = vmatpush1.msra.mxu0 0.0
  %738 = vmatprep.subr.mxu0 0.0
  %739 = vmatpush1.msra.mxu0 0.0
  %740 = vmatprep.subr.mxu0 0.0
  %741 = vmatpush1.msra.mxu0 0.0
  %742 = vmatprep.subr.mxu0 0.0
  %743 = vmatpush1.msra.mxu0 0.0
  %744 = vmatprep.subr.mxu0 0.0
  %745 = vmatpush1.msra.mxu0 0.0
  %746 = vmatprep.subr.mxu0 0.0
  %747 = vmatpush1.msra.mxu0 0.0
  %748 = vmatprep.subr.mxu0 0.0
  %749 = vmatpush1.msra.mxu0 0.0
  %750 = vmatprep.subr.mxu0 0.0
  %751 = vmatpush1.msra.mxu0 0.0
  %752 = vmatprep.subr.mxu0 0.0
  %753 = vmatpush1.msra.mxu0 0.0
  %754 = vmatprep.mubr.f32.mxu0 0.0
  %755 = vmatmul.mubr.f32.gmra.mrb[0].mxu0 %v685
  %v756 = vpop.f32.mrb[0].mxu0
  %v757 = vadd.f32 %v682, %v756
  %v758 = vpop.f32.mrb[0].mxu0
  %759 = vmatprep.mubr.f32.mxu0 0.0
  %760 = vmatmul.mubr.f32.gmra.mrb[0].mxu0 %v688
  %v761 = vpop.f32.mrb[0].mxu0
  %v762 = vadd.f32 %v682, %v761
  %v763 = vpop.f32.mrb[0].mxu0
  %764 = vdwg.mxu0
  %v765 = vadd.f32 %v590, %v757
  %v766 = vadd.f32 %v591, %v762
  %v767 = vsel %vm181, %v765, 0.0
  %768 = vadd.xlane.f32.xlu0 %v767
  %v769 = vpop.xlane.xlu0 %768
  %v770 = vsel %vm181, %v766, 0.0
  %771 = vadd.xlane.f32.xlu0 %v770
  %v772 = vpop.xlane.xlu0 %771
  %v773 = vmul.f32 %v769, %v559
  %v774 = vmul.f32 %v772, %v559
  %v775 = vsub.f32 %v765, %v773
  %v776 = vsub.f32 %v766, %v774
  %v777 = vmul.f32 %v775, %v775
  %v778 = vmul.f32 %v776, %v776
  %v779 = vsel %vm181, %v777, 0.0
  %780 = vadd.xlane.f32.xlu0 %v779
  %v781 = vpop.xlane.xlu0 %780
  %v782 = vsel %vm181, %v778, 0.0
  %783 = vadd.xlane.f32.xlu0 %v782
  %v784 = vpop.xlane.xlu0 %783
  %v785 = vmul.f32 %v781, %v559
  %v786 = vmul.f32 %v784, %v559
  %v787 = vadd.f32 %v785, 1e-05
  %v788 = vadd.f32 %v786, 1e-05
  %v789 = vrsqrt.pop %v787
  %v790 = vrsqrt.pop %v788
  %v791 = vmul.f32 %v775, %v789
  %v792 = vmul.f32 %v776, %v790
  %v793 = vlaneseq
  %v794 = vshrl.u32 %v793, 7
  %v795 = vsub.s32 0, %v794
  %v796 = vrot.slane %v175, %v795
  %v797 = vmul.f32 %v791, %v796
  %v798 = vmul.f32 %v792, %v796
  %v799 = vlaneseq
  %v800 = vshrl.u32 %v799, 7
  %v801 = vsub.s32 0, %v800
  %v802 = vrot.slane %v176, %v801
  %v803 = vadd.f32 %v797, %v802
  %v804 = vadd.f32 %v798, %v802
  %v805 = vld [vmem:[%s2 + $0xa8] sm:$0xff]
  %v806 = vld [vmem:[%s2 + $0xb0] sm:$0xff]
  %v807 = vld [vmem:[%s2 + $0xb8] sm:$0xff]
  %v808 = vld [vmem:[%s2 + $0xc0] sm:$0xff]
  %v809 = vld [vmem:[%s2 + $0xc8] sm:$0xff]
  %v810 = vld [vmem:[%s2 + $0xd0] sm:$0xff]
  %v811 = vld [vmem:[%s2 + $0xd8] sm:$0xff]
  %v812 = vld [vmem:[%s2 + $0xe0] sm:$0xff]
  %v813 = vld [vmem:[%s2 + $0xe8] sm:$0xff]
  %v814 = vld [vmem:[%s2 + $0xf0] sm:$0xff]
  %v815 = vld [vmem:[%s2 + $0xf8] sm:$0xff]
  %v816 = vld [vmem:[%s2 + $0x100] sm:$0xff]
  %v817 = vld [vmem:[%s2 + $0x108] sm:$0xff]
  %v818 = vld [vmem:[%s2 + $0x110] sm:$0xff]
  %v819 = vld [vmem:[%s2 + $0x118] sm:$0xff]
  %v820 = vld [vmem:[%s2 + $0x120] sm:$0xff]
  %v821 = vld [vmem:[%s2 + $0x128] sm:$0xff]
  %v822 = vld [vmem:[%s2 + $0x130] sm:$0xff]
  %v823 = vld [vmem:[%s2 + $0x138] sm:$0xff]
  %v824 = vld [vmem:[%s2 + $0x140] sm:$0xff]
  %v825 = vld [vmem:[%s2 + $0x148] sm:$0x1]
  %v826 = vld [vmem:[%s2 + $0x149] sm:$0x1]
  %v827 = vld [vmem:[%s2 + $0x14a] sm:$0x1]
  %v828 = vld [vmem:[%s2 + $0x14b] sm:$0x1]
  %v829 = vld [vmem:[%s2 + $0x14c] sm:$0x1]
  %v830 = vld [vmem:[%s2 + $0x14d] sm:$0x1]
  %v831 = vld [vmem:[%s2 + $0x14e] sm:$0x1]
  %v832 = vld [vmem:[%s2 + $0x14f] sm:$0x1]
  %v833 = vlaneseq
  %v834 = vshrl.u32 %v833, 7
  %v835 = vsub.s32 0, %v834
  %v836 = vrot.slane %v825, %v835
  %v838 = vsel %vm181, %v803, 0
  %v841 = vsel %vm181, %v804, 0
  %843 = vmatprep.subr.mxu0 0.0
  %844 = vmatpush1.msra.mxu0 %v805
  %845 = vmatprep.subr.mxu0 0.0
  %846 = vmatpush1.msra.mxu0 %v806
  %847 = vmatprep.subr.mxu0 0.0
  %848 = vmatpush1.msra.mxu0 %v807
  %849 = vmatprep.subr.mxu0 0.0
  %850 = vmatpush1.msra.mxu0 %v808
  %851 = vmatprep.subr.mxu0 0.0
  %852 = vmatpush1.msra.mxu0 0.0
  %853 = vmatprep.subr.mxu0 0.0
  %854 = vmatpush1.msra.mxu0 0.0
  %855 = vmatprep.subr.mxu0 0.0
  %856 = vmatpush1.msra.mxu0 0.0
  %857 = vmatprep.subr.mxu0 0.0
  %858 = vmatpush1.msra.mxu0 0.0
  %859 = vmatprep.subr.mxu0 0.0
  %860 = vmatpush1.msra.mxu0 0.0
  %861 = vmatprep.subr.mxu0 0.0
  %862 = vmatpush1.msra.mxu0 0.0
  %863 = vmatprep.subr.mxu0 0.0
  %864 = vmatpush1.msra.mxu0 0.0
  %865 = vmatprep.subr.mxu0 0.0
  %866 = vmatpush1.msra.mxu0 0.0
  %867 = vmatprep.subr.mxu0 0.0
  %868 = vmatpush1.msra.mxu0 0.0
  %869 = vmatprep.subr.mxu0 0.0
  %870 = vmatpush1.msra.mxu0 0.0
  %871 = vmatprep.subr.mxu0 0.0
  %872 = vmatpush1.msra.mxu0 0.0
  %873 = vmatprep.subr.mxu0 0.0
  %874 = vmatpush1.msra.mxu0 0.0
  %875 = vmatprep.subr.mxu0 0.0
  %876 = vmatpush1.msra.mxu0 0.0
  %877 = vmatprep.subr.mxu0 0.0
  %878 = vmatpush1.msra.mxu0 0.0
  %879 = vmatprep.subr.mxu0 0.0
  %880 = vmatpush1.msra.mxu0 0.0
  %881 = vmatprep.subr.mxu0 0.0
  %882 = vmatpush1.msra.mxu0 0.0
  %883 = vmatprep.subr.mxu0 0.0
  %884 = vmatpush1.msra.mxu0 0.0
  %885 = vmatprep.subr.mxu0 0.0
  %886 = vmatpush1.msra.mxu0 0.0
  %887 = vmatprep.subr.mxu0 0.0
  %888 = vmatpush1.msra.mxu0 0.0
  %889 = vmatprep.subr.mxu0 0.0
  %890 = vmatpush1.msra.mxu0 0.0
  %891 = vmatprep.subr.mxu0 0.0
  %892 = vmatpush1.msra.mxu0 0.0
  %893 = vmatprep.subr.mxu0 0.0
  %894 = vmatpush1.msra.mxu0 0.0
  %895 = vmatprep.subr.mxu0 0.0
  %896 = vmatpush1.msra.mxu0 0.0
  %897 = vmatprep.subr.mxu0 0.0
  %898 = vmatpush1.msra.mxu0 0.0
  %899 = vmatprep.subr.mxu0 0.0
  %900 = vmatpush1.msra.mxu0 0.0
  %901 = vmatprep.subr.mxu0 0.0
  %902 = vmatpush1.msra.mxu0 0.0
  %903 = vmatprep.subr.mxu0 0.0
  %904 = vmatpush1.msra.mxu0 0.0
  %905 = vmatprep.subr.mxu0 0.0
  %906 = vmatpush1.msra.mxu0 0.0
  %907 = vmatprep.mubr.f32.mxu0 0.0
  %908 = vmatmul.mubr.f32.gmra.mrb[0].mxu0 %v838
  %v909 = vpop.f32.mrb[0].mxu0
  %v910 = vadd.f32 %v836, %v909
  %v911 = vpop.f32.mrb[0].mxu0
  %912 = vmatprep.mubr.f32.mxu0 0.0
  %913 = vmatmul.mubr.f32.gmra.mrb[0].mxu0 %v841
  %v914 = vpop.f32.mrb[0].mxu0
  %v915 = vadd.f32 %v836, %v914
  %v916 = vpop.f32.mrb[0].mxu0
  %917 = vdwg.mxu0
  %920 = vrot.lane.b32.xlu0 %v910, 96
  %v921 = vpop.permute.xlu0 %920
  %922 = vrot.lane.b32.xlu0 %v915, 96
  %v923 = vpop.permute.xlu0 %922
  %v924 = vsel %vm181, %v910, 0
  %v926 = vsel %vm181, %v915, 0
  %v928 = vsel %vm181, %v921, 0
  %v930 = vsel %vm181, %v923, 0
  %932 = vmatprep.subr.mxu0 0.0
  %933 = vmatpush1.xpose.msra.mxu0 %v928
  %934 = vmatprep.subr.mxu0 0.0
  %935 = vmatpush1.xpose.msra.mxu0 %v930
  %936 = vmatprep.subr.mxu0 0.0
  %937 = vmatpush1.xpose.msra.mxu0 0.0
  %938 = vmatprep.subr.mxu0 0.0
  %939 = vmatpush1.xpose.msra.mxu0 0.0
  %940 = vmatprep.subr.mxu0 0.0
  %941 = vmatpush1.xpose.msra.mxu0 0.0
  %942 = vmatprep.subr.mxu0 0.0
  %943 = vmatpush1.xpose.msra.mxu0 0.0
  %944 = vmatprep.subr.mxu0 0.0
  %945 = vmatpush1.xpose.msra.mxu0 0.0
  %946 = vmatprep.subr.mxu0 0.0
  %947 = vmatpush1.xpose.msra.mxu0 0.0
  %948 = vmatprep.subr.mxu0 0.0
  %949 = vmatpush1.xpose.msra.mxu0 0.0
  %950 = vmatprep.subr.mxu0 0.0
  %951 = vmatpush1.xpose.msra.mxu0 0.0
  %952 = vmatprep.subr.mxu0 0.0
  %953 = vmatpush1.xpose.msra.mxu0 0.0
  %954 = vmatprep.subr.mxu0 0.0
  %955 = vmatpush1.xpose.msra.mxu0 0.0
  %956 = vmatprep.subr.mxu0 0.0
  %957 = vmatpush1.xpose.msra.mxu0 0.0
  %958 = vmatprep.subr.mxu0 0.0
  %959 = vmatpush1.xpose.msra.mxu0 0.0
  %960 = vmatprep.subr.mxu0 0.0
  %961 = vmatpush1.xpose.msra.mxu0 0.0
  %962 = vmatprep.subr.mxu0 0.0
  %963 = vmatpush1.xpose.msra.mxu0 0.0
  %964 = vmatprep.subr.mxu0 0.0
  %965 = vmatpush1.xpose.msra.mxu0 0.0
  %966 = vmatprep.subr.mxu0 0.0
  %967 = vmatpush1.xpose.msra.mxu0 0.0
  %968 = vmatprep.subr.mxu0 0.0
  %969 = vmatpush1.xpose.msra.mxu0 0.0
  %970 = vmatprep.subr.mxu0 0.0
  %971 = vmatpush1.xpose.msra.mxu0 0.0
  %972 = vmatprep.subr.mxu0 0.0
  %973 = vmatpush1.xpose.msra.mxu0 0.0
  %974 = vmatprep.subr.mxu0 0.0
  %975 = vmatpush1.xpose.msra.mxu0 0.0
  %976 = vmatprep.subr.mxu0 0.0
  %977 = vmatpush1.xpose.msra.mxu0 0.0
  %978 = vmatprep.subr.mxu0 0.0
  %979 = vmatpush1.xpose.msra.mxu0 0.0
  %980 = vmatprep.subr.mxu0 0.0
  %981 = vmatpush1.xpose.msra.mxu0 0.0
  %982 = vmatprep.subr.mxu0 0.0
  %983 = vmatpush1.xpose.msra.mxu0 0.0
  %984 = vmatprep.subr.mxu0 0.0
  %985 = vmatpush1.xpose.msra.mxu0 0.0
  %986 = vmatprep.subr.mxu0 0.0
  %987 = vmatpush1.xpose.msra.mxu0 0.0
  %988 = vmatprep.subr.mxu0 0.0
  %989 = vmatpush1.xpose.msra.mxu0 0.0
  %990 = vmatprep.subr.mxu0 0.0
  %991 = vmatpush1.xpose.msra.mxu0 0.0
  %992 = vmatprep.subr.mxu0 0.0
  %993 = vmatpush1.xpose.msra.mxu0 0.0
  %994 = vmatprep.subr.mxu0 0.0
  %995 = vmatpush1.xpose.msra.mxu0 0.0
  %996 = vmatprep.mubr.f32.mxu0 0.0
  %997 = vmatmul.mubr.f32.gmra.mrb[0].mxu0 %v924
  %v998 = vpop.f32.mrb[0].mxu0
  %v999 = vadd.f32 0.0, %v998
  %v1000 = vpop.f32.mrb[0].mxu0
  %1001 = vmatprep.mubr.f32.mxu0 0.0
  %1002 = vmatmul.mubr.f32.gmra.mrb[0].mxu0 %v926
  %v1003 = vpop.f32.mrb[0].mxu0
  %v1004 = vadd.f32 0.0, %v1003
  %v1005 = vpop.f32.mrb[0].mxu0
  %1006 = vdwg.mxu0
  %v1007 = vmul.f32 %v999, 0.17677669
  %v1008 = vmul.f32 %v1004, 0.17677669
  %v1009 = vadd.f32 %v1007, %v147
  %v1010 = vadd.f32 %v1008, %v148
  %v1011 = vsel %vm356, %v1009, -inf
  %1012 = vmax.xlane.f32.xlu0 %v1011
  %v1013 = vpop.xlane.xlu0 %1012
  %v1014 = vsel %vm356, %v1010, -inf
  %1015 = vmax.xlane.f32.xlu0 %v1014
  %v1016 = vpop.xlane.xlu0 %1015
  %v1017 = vsub.f32 %v1009, %v1013
  %v1018 = vsub.f32 %v1010, %v1016
  %v1019 = vmul.f32 %v1017, 1.442695
  %v1020 = vpow.pop %v1019
  %v1021 = vmul.f32 %v1018, 1.442695
  %v1022 = vpow.pop %v1021
  %v1023 = vsel %vm356, %v1020, 0.0
  %1024 = vadd.xlane.f32.xlu0 %v1023
  %v1025 = vpop.xlane.xlu0 %1024
  %v1026 = vsel %vm356, %v1022, 0.0
  %1027 = vadd.xlane.f32.xlu0 %v1026
  %v1028 = vpop.xlane.xlu0 %1027
  %v1029 = vrcp.pop %v1025
  %v1030 = vrcp.pop %v1028
  %v1031 = vmul.f32 %v1020, %v1029
  %v1032 = vmul.f32 %v1022, %v1030
  %1033 = vrot.lane.b32.xlu0 %v910, 64
  %v1034 = vpop.permute.xlu0 %1033
  %1035 = vrot.lane.b32.xlu0 %v915, 64
  %v1036 = vpop.permute.xlu0 %1035
  %v1040 = vsel %vm356, %v1031, 0
  %v1043 = vsel %vm356, %v1032, 0
  %1045 = vmatprep.subr.mxu0 0.0
  %1046 = vmatpush1.msra.mxu0 %v1034
  %1047 = vmatprep.subr.mxu0 0.0
  %1048 = vmatpush1.msra.mxu0 %v1036
  %1049 = vmatprep.subr.mxu0 0.0
  %1050 = vmatpush1.msra.mxu0 0.0
  %1051 = vmatprep.subr.mxu0 0.0
  %1052 = vmatpush1.msra.mxu0 0.0
  %1053 = vmatprep.subr.mxu0 0.0
  %1054 = vmatpush1.msra.mxu0 0.0
  %1055 = vmatprep.subr.mxu0 0.0
  %1056 = vmatpush1.msra.mxu0 0.0
  %1057 = vmatprep.subr.mxu0 0.0
  %1058 = vmatpush1.msra.mxu0 0.0
  %1059 = vmatprep.subr.mxu0 0.0
  %1060 = vmatpush1.msra.mxu0 0.0
  %1061 = vmatprep.subr.mxu0 0.0
  %1062 = vmatpush1.msra.mxu0 0.0
  %1063 = vmatprep.subr.mxu0 0.0
  %1064 = vmatpush1.msra.mxu0 0.0
  %1065 = vmatprep.subr.mxu0 0.0
  %1066 = vmatpush1.msra.mxu0 0.0
  %1067 = vmatprep.subr.mxu0 0.0
  %1068 = vmatpush1.msra.mxu0 0.0
  %1069 = vmatprep.subr.mxu0 0.0
  %1070 = vmatpush1.msra.mxu0 0.0
  %1071 = vmatprep.subr.mxu0 0.0
  %1072 = vmatpush1.msra.mxu0 0.0
  %1073 = vmatprep.subr.mxu0 0.0
  %1074 = vmatpush1.msra.mxu0 0.0
  %1075 = vmatprep.subr.mxu0 0.0
  %1076 = vmatpush1.msra.mxu0 0.0
  %1077 = vmatprep.subr.mxu0 0.0
  %1078 = vmatpush1.msra.mxu0 0.0
  %1079 = vmatprep.subr.mxu0 0.0
  %1080 = vmatpush1.msra.mxu0 0.0
  %1081 = vmatprep.subr.mxu0 0.0
  %1082 = vmatpush1.msra.mxu0 0.0
  %1083 = vmatprep.subr.mxu0 0.0
  %1084 = vmatpush1.msra.mxu0 0.0
  %1085 = vmatprep.subr.mxu0 0.0
  %1086 = vmatpush1.msra.mxu0 0.0
  %1087 = vmatprep.subr.mxu0 0.0
  %1088 = vmatpush1.msra.mxu0 0.0
  %1089 = vmatprep.subr.mxu0 0.0
  %1090 = vmatpush1.msra.mxu0 0.0
  %1091 = vmatprep.subr.mxu0 0.0
  %1092 = vmatpush1.msra.mxu0 0.0
  %1093 = vmatprep.subr.mxu0 0.0
  %1094 = vmatpush1.msra.mxu0 0.0
  %1095 = vmatprep.subr.mxu0 0.0
  %1096 = vmatpush1.msra.mxu0 0.0
  %1097 = vmatprep.subr.mxu0 0.0
  %1098 = vmatpush1.msra.mxu0 0.0
  %1099 = vmatprep.subr.mxu0 0.0
  %1100 = vmatpush1.msra.mxu0 0.0
  %1101 = vmatprep.subr.mxu0 0.0
  %1102 = vmatpush1.msra.mxu0 0.0
  %1103 = vmatprep.subr.mxu0 0.0
  %1104 = vmatpush1.msra.mxu0 0.0
  %1105 = vmatprep.subr.mxu0 0.0
  %1106 = vmatpush1.msra.mxu0 0.0
  %1107 = vmatprep.subr.mxu0 0.0
  %1108 = vmatpush1.msra.mxu0 0.0
  %1109 = vmatprep.mubr.f32.mxu0 0.0
  %1110 = vmatmul.mubr.f32.gmra.mrb[0].mxu0 %v1040
  %v1111 = vpop.f32.mrb[0].mxu0
  %v1112 = vadd.f32 0.0, %v1111
  %v1113 = vpop.f32.mrb[0].mxu0
  %1114 = vmatprep.mubr.f32.mxu0 0.0
  %1115 = vmatmul.mubr.f32.gmra.mrb[0].mxu0 %v1043
  %v1116 = vpop.f32.mrb[0].mxu0
  %v1117 = vadd.f32 0.0, %v1116
  %v1118 = vpop.f32.mrb[0].mxu0
  %1119 = vdwg.mxu0
  %v1120 = vlaneseq
  %v1121 = vshrl.u32 %v1120, 7
  %v1122 = vsub.s32 0, %v1121
  %v1123 = vrot.slane %v826, %v1122
  %v1125 = vsel %vm181, %v1112, 0
  %v1128 = vsel %vm181, %v1117, 0
  %1130 = vmatprep.subr.mxu0 0.0
  %1131 = vmatpush1.msra.mxu0 %v809
  %1132 = vmatprep.subr.mxu0 0.0
  %1133 = vmatpush1.msra.mxu0 %v810
  %1134 = vmatprep.subr.mxu0 0.0
  %1135 = vmatpush1.msra.mxu0 %v811
  %1136 = vmatprep.subr.mxu0 0.0
  %1137 = vmatpush1.msra.mxu0 %v812
  %1138 = vmatprep.subr.mxu0 0.0
  %1139 = vmatpush1.msra.mxu0 0.0
  %1140 = vmatprep.subr.mxu0 0.0
  %1141 = vmatpush1.msra.mxu0 0.0
  %1142 = vmatprep.subr.mxu0 0.0
  %1143 = vmatpush1.msra.mxu0 0.0
  %1144 = vmatprep.subr.mxu0 0.0
  %1145 = vmatpush1.msra.mxu0 0.0
  %1146 = vmatprep.subr.mxu0 0.0
  %1147 = vmatpush1.msra.mxu0 0.0
  %1148 = vmatprep.subr.mxu0 0.0
  %1149 = vmatpush1.msra.mxu0 0.0
  %1150 = vmatprep.subr.mxu0 0.0
  %1151 = vmatpush1.msra.mxu0 0.0
  %1152 = vmatprep.subr.mxu0 0.0
  %1153 = vmatpush1.msra.mxu0 0.0
  %1154 = vmatprep.subr.mxu0 0.0
  %1155 = vmatpush1.msra.mxu0 0.0
  %1156 = vmatprep.subr.mxu0 0.0
  %1157 = vmatpush1.msra.mxu0 0.0
  %1158 = vmatprep.subr.mxu0 0.0
  %1159 = vmatpush1.msra.mxu0 0.0
  %1160 = vmatprep.subr.mxu0 0.0
  %1161 = vmatpush1.msra.mxu0 0.0
  %1162 = vmatprep.subr.mxu0 0.0
  %1163 = vmatpush1.msra.mxu0 0.0
  %1164 = vmatprep.subr.mxu0 0.0
  %1165 = vmatpush1.msra.mxu0 0.0
  %1166 = vmatprep.subr.mxu0 0.0
  %1167 = vmatpush1.msra.mxu0 0.0
  %1168 = vmatprep.subr.mxu0 0.0
  %1169 = vmatpush1.msra.mxu0 0.0
  %1170 = vmatprep.subr.mxu0 0.0
  %1171 = vmatpush1.msra.mxu0 0.0
  %1172 = vmatprep.subr.mxu0 0.0
  %1173 = vmatpush1.msra.mxu0 0.0
  %1174 = vmatprep.subr.mxu0 0.0
  %1175 = vmatpush1.msra.mxu0 0.0
  %1176 = vmatprep.subr.mxu0 0.0
  %1177 = vmatpush1.msra.mxu0 0.0
  %1178 = vmatprep.subr.mxu0 0.0
  %1179 = vmatpush1.msra.mxu0 0.0
  %1180 = vmatprep.subr.mxu0 0.0
  %1181 = vmatpush1.msra.mxu0 0.0
  %1182 = vmatprep.subr.mxu0 0.0
  %1183 = vmatpush1.msra.mxu0 0.0
  %1184 = vmatprep.subr.mxu0 0.0
  %1185 = vmatpush1.msra.mxu0 0.0
  %1186 = vmatprep.subr.mxu0 0.0
  %1187 = vmatpush1.msra.mxu0 0.0
  %1188 = vmatprep.subr.mxu0 0.0
  %1189 = vmatpush1.msra.mxu0 0.0
  %1190 = vmatprep.subr.mxu0 0.0
  %1191 = vmatpush1.msra.mxu0 0.0
  %1192 = vmatprep.subr.mxu0 0.0
  %1193 = vmatpush1.msra.mxu0 0.0
  %1194 = vmatprep.mubr.f32.mxu0 0.0
  %1195 = vmatmul.mubr.f32.gmra.mrb[0].mxu0 %v1125
  %v1196 = vpop.f32.mrb[0].mxu0
  %v1197 = vadd.f32 %v1123, %v1196
  %v1198 = vpop.f32.mrb[0].mxu0
  %1199 = vmatprep.mubr.f32.mxu0 0.0
  %1200 = vmatmul.mubr.f32.gmra.mrb[0].mxu0 %v1128
  %v1201 = vpop.f32.mrb[0].mxu0
  %v1202 = vadd.f32 %v1123, %v1201
  %v1203 = vpop.f32.mrb[0].mxu0
  %1204 = vdwg.mxu0
  %v1205 = vadd.f32 %v803, %v1197
  %v1206 = vadd.f32 %v804, %v1202
  %v1207 = vsel %vm181, %v1205, 0.0
  %1208 = vadd.xlane.f32.xlu0 %v1207
  %v1209 = vpop.xlane.xlu0 %1208
  %v1210 = vsel %vm181, %v1206, 0.0
  %1211 = vadd.xlane.f32.xlu0 %v1210
  %v1212 = vpop.xlane.xlu0 %1211
  %v1213 = vmul.f32 %v1209, %v559
  %v1214 = vmul.f32 %v1212, %v559
  %v1215 = vsub.f32 %v1205, %v1213
  %v1216 = vsub.f32 %v1206, %v1214
  %v1217 = vmul.f32 %v1215, %v1215
  %v1218 = vmul.f32 %v1216, %v1216
  %v1219 = vsel %vm181, %v1217, 0.0
  %1220 = vadd.xlane.f32.xlu0 %v1219
  %v1221 = vpop.xlane.xlu0 %1220
  %v1222 = vsel %vm181, %v1218, 0.0
  %1223 = vadd.xlane.f32.xlu0 %v1222
  %v1224 = vpop.xlane.xlu0 %1223
  %v1225 = vmul.f32 %v1221, %v559
  %v1226 = vmul.f32 %v1224, %v559
  %v1227 = vadd.f32 %v1225, 1e-05
  %v1228 = vadd.f32 %v1226, 1e-05
  %v1229 = vrsqrt.pop %v1227
  %v1230 = vrsqrt.pop %v1228
  %v1231 = vmul.f32 %v1215, %v1229
  %v1232 = vmul.f32 %v1216, %v1230
  %v1233 = vlaneseq
  %v1234 = vshrl.u32 %v1233, 7
  %v1235 = vsub.s32 0, %v1234
  %v1236 = vrot.slane %v827, %v1235
  %v1237 = vmul.f32 %v1231, %v1236
  %v1238 = vmul.f32 %v1232, %v1236
  %v1239 = vlaneseq
  %v1240 = vshrl.u32 %v1239, 7
  %v1241 = vsub.s32 0, %v1240
  %v1242 = vrot.slane %v828, %v1241
  %v1243 = vadd.f32 %v1237, %v1242
  %v1244 = vadd.f32 %v1238, %v1242
  %v1245 = vlaneseq
  %v1246 = vshrl.u32 %v1245, 7
  %v1247 = vsub.s32 0, %v1246
  %v1248 = vrot.slane %v829, %v1247
  %v1250 = vsel %vm181, %v1243, 0
  %v1253 = vsel %vm181, %v1244, 0
  %1255 = vmatprep.subr.mxu0 0.0
  %1256 = vmatpush1.msra.mxu0 %v813
  %1257 = vmatprep.subr.mxu0 0.0
  %1258 = vmatpush1.msra.mxu0 %v814
  %1259 = vmatprep.subr.mxu0 0.0
  %1260 = vmatpush1.msra.mxu0 %v815
  %1261 = vmatprep.subr.mxu0 0.0
  %1262 = vmatpush1.msra.mxu0 %v816
  %1263 = vmatprep.subr.mxu0 0.0
  %1264 = vmatpush1.msra.mxu0 0.0
  %1265 = vmatprep.subr.mxu0 0.0
  %1266 = vmatpush1.msra.mxu0 0.0
  %1267 = vmatprep.subr.mxu0 0.0
  %1268 = vmatpush1.msra.mxu0 0.0
  %1269 = vmatprep.subr.mxu0 0.0
  %1270 = vmatpush1.msra.mxu0 0.0
  %1271 = vmatprep.subr.mxu0 0.0
  %1272 = vmatpush1.msra.mxu0 0.0
  %1273 = vmatprep.subr.mxu0 0.0
  %1274 = vmatpush1.msra.mxu0 0.0
  %1275 = vmatprep.subr.mxu0 0.0
  %1276 = vmatpush1.msra.mxu0 0.0
  %1277 = vmatprep.subr.mxu0 0.0
  %1278 = vmatpush1.msra.mxu0 0.0
  %1279 = vmatprep.subr.mxu0 0.0
  %1280 = vmatpush1.msra.mxu0 0.0
  %1281 = vmatprep.subr.mxu0 0.0
  %1282 = vmatpush1.msra.mxu0 0.0
  %1283 = vmatprep.subr.mxu0 0.0
  %1284 = vmatpush1.msra.mxu0 0.0
  %1285 = vmatprep.subr.mxu0 0.0
  %1286 = vmatpush1.msra.mxu0 0.0
  %1287 = vmatprep.subr.mxu0 0.0
  %1288 = vmatpush1.msra.mxu0 0.0
  %1289 = vmatprep.subr.mxu0 0.0
  %1290 = vmatpush1.msra.mxu0 0.0
  %1291 = vmatprep.subr.mxu0 0.0
  %1292 = vmatpush1.msra.mxu0 0.0
  %1293 = vmatprep.subr.mxu0 0.0
  %1294 = vmatpush1.msra.mxu0 0.0
  %1295 = vmatprep.subr.mxu0 0.0
  %1296 = vmatpush1.msra.mxu0 0.0
  %1297 = vmatprep.subr.mxu0 0.0
  %1298 = vmatpush1.msra.mxu0 0.0
  %1299 = vmatprep.subr.mxu0 0.0
  %1300 = vmatpush1.msra.mxu0 0.0
  %1301 = vmatprep.subr.mxu0 0.0
  %1302 = vmatpush1.msra.mxu0 0.0
  %1303 = vmatprep.subr.mxu0 0.0
  %1304 = vmatpush1.msra.mxu0 0.0
  %1305 = vmatprep.subr.mxu0 0.0
  %1306 = vmatpush1.msra.mxu0 0.0
  %1307 = vmatprep.subr.mxu0 0.0
  %1308 = vmatpush1.msra.mxu0 0.0
  %1309 = vmatprep.subr.mxu0 0.0
  %1310 = vmatpush1.msra.mxu0 0.0
  %1311 = vmatprep.subr.mxu0 0.0
  %1312 = vmatpush1.msra.mxu0 0.0
  %1313 = vmatprep.subr.mxu0 0.0
  %1314 = vmatpush1.msra.mxu0 0.0
  %1315 = vmatprep.subr.mxu0 0.0
  %1316 = vmatpush1.msra.mxu0 0.0
  %1317 = vmatprep.subr.mxu0 0.0
  %1318 = vmatpush1.msra.mxu0 0.0
  %1319 = vmatprep.mubr.f32.mxu0 0.0
  %1320 = vmatmul.mubr.f32.gmra.mrb[0].mxu0 %v1250
  %v1321 = vpop.f32.mrb[0].mxu0
  %v1322 = vadd.f32 %v1248, %v1321
  %v1323 = vpop.f32.mrb[0].mxu0
  %1324 = vmatprep.mubr.f32.mxu0 0.0
  %1325 = vmatmul.mubr.f32.gmra.mrb[0].mxu0 %v1253
  %v1326 = vpop.f32.mrb[0].mxu0
  %v1327 = vadd.f32 %v1248, %v1326
  %v1328 = vpop.f32.mrb[0].mxu0
  %1329 = vdwg.mxu0
  %v1330 = vmax.f32 %v1322, 0.0
  %v1331 = vmax.f32 %v1327, 0.0
  %v1332 = vlaneseq
  %v1333 = vshrl.u32 %v1332, 7
  %v1334 = vsub.s32 0, %v1333
  %v1335 = vrot.slane %v830, %v1334
  %v1337 = vsel %vm683, %v1330, 0
  %v1340 = vsel %vm683, %v1331, 0
  %1342 = vmatprep.subr.mxu0 0.0
  %1343 = vmatpush1.msra.mxu0 %v817
  %1344 = vmatprep.subr.mxu0 0.0
  %1345 = vmatpush1.msra.mxu0 %v818
  %1346 = vmatprep.subr.mxu0 0.0
  %1347 = vmatpush1.msra.mxu0 %v819
  %1348 = vmatprep.subr.mxu0 0.0
  %1349 = vmatpush1.msra.mxu0 %v820
  %1350 = vmatprep.subr.mxu0 0.0
  %1351 = vmatpush1.msra.mxu0 %v821
  %1352 = vmatprep.subr.mxu0 0.0
  %1353 = vmatpush1.msra.mxu0 %v822
  %1354 = vmatprep.subr.mxu0 0.0
  %1355 = vmatpush1.msra.mxu0 %v823
  %1356 = vmatprep.subr.mxu0 0.0
  %1357 = vmatpush1.msra.mxu0 %v824
  %1358 = vmatprep.subr.mxu0 0.0
  %1359 = vmatpush1.msra.mxu0 0.0
  %1360 = vmatprep.subr.mxu0 0.0
  %1361 = vmatpush1.msra.mxu0 0.0
  %1362 = vmatprep.subr.mxu0 0.0
  %1363 = vmatpush1.msra.mxu0 0.0
  %1364 = vmatprep.subr.mxu0 0.0
  %1365 = vmatpush1.msra.mxu0 0.0
  %1366 = vmatprep.subr.mxu0 0.0
  %1367 = vmatpush1.msra.mxu0 0.0
  %1368 = vmatprep.subr.mxu0 0.0
  %1369 = vmatpush1.msra.mxu0 0.0
  %1370 = vmatprep.subr.mxu0 0.0
  %1371 = vmatpush1.msra.mxu0 0.0
  %1372 = vmatprep.subr.mxu0 0.0
  %1373 = vmatpush1.msra.mxu0 0.0
  %1374 = vmatprep.subr.mxu0 0.0
  %1375 = vmatpush1.msra.mxu0 0.0
  %1376 = vmatprep.subr.mxu0 0.0
  %1377 = vmatpush1.msra.mxu0 0.0
  %1378 = vmatprep.subr.mxu0 0.0
  %1379 = vmatpush1.msra.mxu0 0.0
  %1380 = vmatprep.subr.mxu0 0.0
  %1381 = vmatpush1.msra.mxu0 0.0
  %1382 = vmatprep.subr.mxu0 0.0
  %1383 = vmatpush1.msra.mxu0 0.0
  %1384 = vmatprep.subr.mxu0 0.0
  %1385 = vmatpush1.msra.mxu0 0.0
  %1386 = vmatprep.subr.mxu0 0.0
  %1387 = vmatpush1.msra.mxu0 0.0
  %1388 = vmatprep.subr.mxu0 0.0
  %1389 = vmatpush1.msra.mxu0 0.0
  %1390 = vmatprep.subr.mxu0 0.0
  %1391 = vmatpush1.msra.mxu0 0.0
  %1392 = vmatprep.subr.mxu0 0.0
  %1393 = vmatpush1.msra.mxu0 0.0
  %1394 = vmatprep.subr.mxu0 0.0
  %1395 = vmatpush1.msra.mxu0 0.0
  %1396 = vmatprep.subr.mxu0 0.0
  %1397 = vmatpush1.msra.mxu0 0.0
  %1398 = vmatprep.subr.mxu0 0.0
  %1399 = vmatpush1.msra.mxu0 0.0
  %1400 = vmatprep.subr.mxu0 0.0
  %1401 = vmatpush1.msra.mxu0 0.0
  %1402 = vmatprep.subr.mxu0 0.0
  %1403 = vmatpush1.msra.mxu0 0.0
  %1404 = vmatprep.subr.mxu0 0.0
  %1405 = vmatpush1.msra.mxu0 0.0
  %1406 = vmatprep.mubr.f32.mxu0 0.0
  %1407 = vmatmul.mubr.f32.gmra.mrb[0].mxu0 %v1337
  %v1408 = vpop.f32.mrb[0].mxu0
  %v1409 = vadd.f32 %v1335, %v1408
  %v1410 = vpop.f32.mrb[0].mxu0
  %1411 = vmatprep.mubr.f32.mxu0 0.0
  %1412 = vmatmul.mubr.f32.gmra.mrb[0].mxu0 %v1340
  %v1413 = vpop.f32.mrb[0].mxu0
  %v1414 = vadd.f32 %v1335, %v1413
  %v1415 = vpop.f32.mrb[0].mxu0
  %1416 = vdwg.mxu0
  %v1417 = vadd.f32 %v1243, %v1409
  %v1418 = vadd.f32 %v1244, %v1414
  %v1419 = vsel %vm181, %v1417, 0.0
  %1420 = vadd.xlane.f32.xlu0 %v1419
  %v1421 = vpop.xlane.xlu0 %1420
  %v1422 = vsel %vm181, %v1418, 0.0
  %1423 = vadd.xlane.f32.xlu0 %v1422
  %v1424 = vpop.xlane.xlu0 %1423
  %v1425 = vmul.f32 %v1421, %v559
  %v1426 = vmul.f32 %v1424, %v559
  %v1427 = vsub.f32 %v1417, %v1425
  %v1428 = vsub.f32 %v1418, %v1426
  %v1429 = vmul.f32 %v1427, %v1427
  %v1430 = vmul.f32 %v1428, %v1428
  %v1431 = vsel %vm181, %v1429, 0.0
  %1432 = vadd.xlane.f32.xlu0 %v1431
  %v1433 = vpop.xlane.xlu0 %1432
  %v1434 = vsel %vm181, %v1430, 0.0
  %1435 = vadd.xlane.f32.xlu0 %v1434
  %v1436 = vpop.xlane.xlu0 %1435
  %v1437 = vmul.f32 %v1433, %v559
  %v1438 = vmul.f32 %v1436, %v559
  %v1439 = vadd.f32 %v1437, 1e-05
  %v1440 = vadd.f32 %v1438, 1e-05
  %v1441 = vrsqrt.pop %v1439
  %v1442 = vrsqrt.pop %v1440
  %v1443 = vmul.f32 %v1427, %v1441
  %v1444 = vmul.f32 %v1428, %v1442
  %v1445 = vlaneseq
  %v1446 = vshrl.u32 %v1445, 7
  %v1447 = vsub.s32 0, %v1446
  %v1448 = vrot.slane %v831, %v1447
  %v1449 = vmul.f32 %v1443, %v1448
  %v1450 = vmul.f32 %v1444, %v1448
  %v1451 = vlaneseq
  %v1452 = vshrl.u32 %v1451, 7
  %v1453 = vsub.s32 0, %v1452
  %v1454 = vrot.slane %v832, %v1453
  %v1455 = vadd.f32 %v1449, %v1454
  %v1456 = vadd.f32 %v1450, %v1454
  %v1457 = vld [vmem:[%s2 + $0x150] sm:$0x1]
  %v1458 = vld [vmem:[%s2 + $0x151] sm:$0x1]
  %v1459 = vld [vmem:[%s2 + $0x152] sm:$0x1]
  %v1460 = vld [vmem:[%s2 + $0x158] sm:$0xff]
  %v1461 = vld [vmem:[%s2 + $0x160] sm:$0xff]
  %v1462 = vld [vmem:[%s2 + $0x168] sm:$0xff]
  %v1463 = vld [vmem:[%s2 + $0x170] sm:$0xff]
  %v1464 = vsel %vm181, %v1455, 0.0
  %1465 = vadd.xlane.f32.xlu0 %v1464
  %v1466 = vpop.xlane.xlu0 %1465
  %v1467 = vsel %vm181, %v1456, 0.0
  %1468 = vadd.xlane.f32.xlu0 %v1467
  %v1469 = vpop.xlane.xlu0 %1468
  %v1470 = vmul.f32 %v1466, %v559
  %v1471 = vmul.f32 %v1469, %v559
  %v1472 = vsub.f32 %v1455, %v1470
  %v1473 = vsub.f32 %v1456, %v1471
  %v1474 = vmul.f32 %v1472, %v1472
  %v1475 = vmul.f32 %v1473, %v1473
  %v1476 = vsel %vm181, %v1474, 0.0
  %1477 = vadd.xlane.f32.xlu0 %v1476
  %v1478 = vpop.xlane.xlu0 %1477
  %v1479 = vsel %vm181, %v1475, 0.0
  %1480 = vadd.xlane.f32.xlu0 %v1479
  %v1481 = vpop.xlane.xlu0 %1480
  %v1482 = vmul.f32 %v1478, %v559
  %v1483 = vmul.f32 %v1481, %v559
  %v1484 = vadd.f32 %v1482, 1e-05
  %v1485 = vadd.f32 %v1483, 1e-05
  %v1486 = vrsqrt.pop %v1484
  %v1487 = vrsqrt.pop %v1485
  %v1488 = vmul.f32 %v1472, %v1486
  %v1489 = vmul.f32 %v1473, %v1487
  %v1490 = vlaneseq
  %v1491 = vshrl.u32 %v1490, 7
  %v1492 = vsub.s32 0, %v1491
  %v1493 = vrot.slane %v1457, %v1492
  %v1494 = vmul.f32 %v1488, %v1493
  %v1495 = vmul.f32 %v1489, %v1493
  %v1496 = vlaneseq
  %v1497 = vshrl.u32 %v1496, 7
  %v1498 = vsub.s32 0, %v1497
  %v1499 = vrot.slane %v1458, %v1498
  %v1500 = vadd.f32 %v1494, %v1499
  %v1501 = vadd.f32 %v1495, %v1499
  %v1502 = vlaneseq
  %v1503 = vshrl.u32 %v1502, 7
  %v1504 = vsub.s32 0, %v1503
  %v1505 = vrot.slane %v1459, %v1504
  %v1507 = vsel %vm181, %v1500, 0
  %v1510 = vsel %vm181, %v1501, 0
  %1512 = vmatprep.subr.mxu0 0.0
  %1513 = vmatpush1.msra.mxu0 %v1460
  %1514 = vmatprep.subr.mxu0 0.0
  %1515 = vmatpush1.msra.mxu0 %v1461
  %1516 = vmatprep.subr.mxu0 0.0
  %1517 = vmatpush1.msra.mxu0 %v1462
  %1518 = vmatprep.subr.mxu0 0.0
  %1519 = vmatpush1.msra.mxu0 %v1463
  %1520 = vmatprep.subr.mxu0 0.0
  %1521 = vmatpush1.msra.mxu0 0.0
  %1522 = vmatprep.subr.mxu0 0.0
  %1523 = vmatpush1.msra.mxu0 0.0
  %1524 = vmatprep.subr.mxu0 0.0
  %1525 = vmatpush1.msra.mxu0 0.0
  %1526 = vmatprep.subr.mxu0 0.0
  %1527 = vmatpush1.msra.mxu0 0.0
  %1528 = vmatprep.subr.mxu0 0.0
  %1529 = vmatpush1.msra.mxu0 0.0
  %1530 = vmatprep.subr.mxu0 0.0
  %1531 = vmatpush1.msra.mxu0 0.0
  %1532 = vmatprep.subr.mxu0 0.0
  %1533 = vmatpush1.msra.mxu0 0.0
  %1534 = vmatprep.subr.mxu0 0.0
  %1535 = vmatpush1.msra.mxu0 0.0
  %1536 = vmatprep.subr.mxu0 0.0
  %1537 = vmatpush1.msra.mxu0 0.0
  %1538 = vmatprep.subr.mxu0 0.0
  %1539 = vmatpush1.msra.mxu0 0.0
  %1540 = vmatprep.subr.mxu0 0.0
  %1541 = vmatpush1.msra.mxu0 0.0
  %1542 = vmatprep.subr.mxu0 0.0
  %1543 = vmatpush1.msra.mxu0 0.0
  %1544 = vmatprep.subr.mxu0 0.0
  %1545 = vmatpush1.msra.mxu0 0.0
  %1546 = vmatprep.subr.mxu0 0.0
  %1547 = vmatpush1.msra.mxu0 0.0
  %1548 = vmatprep.subr.mxu0 0.0
  %1549 = vmatpush1.msra.mxu0 0.0
  %1550 = vmatprep.subr.mxu0 0.0
  %1551 = vmatpush1.msra.mxu0 0.0
  %1552 = vmatprep.subr.mxu0 0.0
  %1553 = vmatpush1.msra.mxu0 0.0
  %1554 = vmatprep.subr.mxu0 0.0
  %1555 = vmatpush1.msra.mxu0 0.0
  %1556 = vmatprep.subr.mxu0 0.0
  %1557 = vmatpush1.msra.mxu0 0.0
  %1558 = vmatprep.subr.mxu0 0.0
  %1559 = vmatpush1.msra.mxu0 0.0
  %1560 = vmatprep.subr.mxu0 0.0
  %1561 = vmatpush1.msra.mxu0 0.0
  %1562 = vmatprep.subr.mxu0 0.0
  %1563 = vmatpush1.msra.mxu0 0.0
  %1564 = vmatprep.subr.mxu0 0.0
  %1565 = vmatpush1.msra.mxu0 0.0
  %1566 = vmatprep.subr.mxu0 0.0
  %1567 = vmatpush1.msra.mxu0 0.0
  %1568 = vmatprep.subr.mxu0 0.0
  %1569 = vmatpush1.msra.mxu0 0.0
  %1570 = vmatprep.subr.mxu0 0.0
  %1571 = vmatpush1.msra.mxu0 0.0
  %1572 = vmatprep.subr.mxu0 0.0
  %1573 = vmatpush1.msra.mxu0 0.0
  %1574 = vmatprep.subr.mxu0 0.0
  %1575 = vmatpush1.msra.mxu0 0.0
  %1576 = vmatprep.mubr.f32.mxu0 0.0
  %1577 = vmatmul.mubr.f32.gmra.mrb[0].mxu0 %v1507
  %v1578 = vpop.f32.mrb[0].mxu0
  %v1579 = vadd.f32 %v1505, %v1578
  %v1580 = vpop.f32.mrb[0].mxu0
  %1581 = vmatprep.mubr.f32.mxu0 0.0
  %1582 = vmatmul.mubr.f32.gmra.mrb[0].mxu0 %v1510
  %v1583 = vpop.f32.mrb[0].mxu0
  %v1584 = vadd.f32 %v1505, %v1583
  %v1585 = vpop.f32.mrb[0].mxu0
  %1586 = vdwg.mxu0
  %1587 = vst.msk [vmem:[%s3] sm:$0xff] %vm181, %v1579
  %1588 = vst.msk [vmem:[%s3 + $0x8] sm:$0xff] %vm181, %v1584
  // Predicated region
  $region14: #{transformer_forward.1} parent=0 // pred_check
    _
  $region15: #{transformer_forward.1} parent=0 // pred_check_branch
    %1590 = sbr.rel (0) target = $region17
  $region16: #{transformer_forward.1} parent=0 // pred_region
    _
  $region17: #{transformer_forward.1} parent=0 // pred_fallthru
    _
  // Predicated region
  $region18: #{transformer_forward.1} parent=0 // pred_check
    _
  $region19: #{transformer_forward.1} parent=0 // pred_check_branch
    %1592 = sbr.rel (0) target = $region21
  $region20: #{transformer_forward.1} parent=0 // pred_region
    _
  $region21: #{transformer_forward.1} parent=0 // pred_fallthru
    _

</llo_original>
